<compile_context>
chip_gen: v7x
topology: tpu7x:2x2x1
jax: 0.10.0
libtpu: 0.0.40
codegen_flags: <defaults>
</compile_context>

<pallas_src>
import functools

import jax
import jax.numpy as jnp
from jax.experimental import pallas as pl
from jax.experimental.pallas import tpu as pltpu


# ----------------------------- configuration -----------------------------
Z_SIZE     = 32          # cfg.z_size
Z_SLICE    = [0, -1]     # cfg.value_decoder.z_slice  (-1 -> z_size)
HIDDEN     = 32          # cfg.decoder.size_hidden
TOKEN_CNT  = 16          # cfg.io_format.token_cnt
MAX_LENGTH = 8           # max_length argument of forward()
BATCH      = 2

GATE_PAD   = 128         # each LSTM gate occupies its own 128-lane tile
VOCAB_PAD  = 128         # logits padded to a full lane tile (unmasked store)

_zs = list(Z_SLICE)
if _zs[1] == -1:
    _zs[1] = Z_SIZE
INPUT_SIZE = _zs[1] - _zs[0]


# ------------------------------- kernel ----------------------------------
def decoder_kernel(z_ref, w_in_ref, b_in_ref,
                   w_gih_ref, w_ghh_ref, b_g_ref,
                   w_out_ref, b_out_ref,
                   out_ref,                         # [T*B, VOCAB_PAD]
                   *, hidden_size, max_length):
    H  = hidden_size
    GP = GATE_PAD
    B  = z_ref.shape[0]

    # linear_in + ReLU  (the same x feeds the LSTM at every timestep)
    z = z_ref[...]                                                  # [B, D]
    x = jnp.maximum(
        jnp.dot(z, w_in_ref[...], preferred_element_type=jnp.float32)
        + b_in_ref[...], 0.0)                                       # [B, H]

    # input + bias contribution to the gates is constant over time -> hoist
    pre = (jnp.dot(x, w_gih_ref[...], preferred_element_type=jnp.float32)
           + b_g_ref[...])                                          # [B, 4*GP]

    w_hh = w_ghh_ref[...]                                           # [H, 4*GP]

    # h0 = c0 = 0 ; state stays in vregs, loop is fully unrolled (T static)
    h = jnp.zeros((B, H), jnp.float32)
    c = jnp.zeros((B, H), jnp.float32)

    hs = []
    for _ in range(max_length):
        gates = pre + jnp.dot(h, w_hh,
                              preferred_element_type=jnp.float32)   # [B, 4*GP]
        # PyTorch LSTM gate order: i, f, g, o — each gate block is 128-lane
        # aligned, slices start at lane 0 of their vreg (no lane rotation).
        i_g = jax.nn.sigmoid(gates[:, 0 * GP:0 * GP + H])
        f_g = jax.nn.sigmoid(gates[:, 1 * GP:1 * GP + H])
        g_g = jnp.tanh(      gates[:, 2 * GP:2 * GP + H])
        o_g = jax.nn.sigmoid(gates[:, 3 * GP:3 * GP + H])

        c = f_g * c + i_g * g_g
        h = o_g * jnp.tanh(c)
        hs.append(jnp.maximum(h, 0.0))          # relu before linear_out

    # Output projection hoisted out of the recurrence:
    # one matmul + one lane-dense unmasked store.
    hs_all = jnp.concatenate(hs, axis=0)                            # [T*B, H]
    logits = (jnp.dot(hs_all, w_out_ref[...],
                      preferred_element_type=jnp.float32)
              + b_out_ref[...])                                     # [T*B, Vp]
    out_ref[...] = logits


# ------------------------------- wrapper ----------------------------------
def _pad_gate_weight(w):
    """w: [4H, H] (PyTorch (out,in)) -> [H, 4*GATE_PAD], each gate in its own
    128-lane tile, zero elsewhere."""
    wt = jnp.asarray(w, jnp.float32).T                   # [H, 4H]
    wp = jnp.zeros((HIDDEN, 4 * GATE_PAD), jnp.float32)
    for k in range(4):
        wp = wp.at[:, k * GATE_PAD:k * GATE_PAD + HIDDEN].set(
            wt[:, k * HIDDEN:(k + 1) * HIDDEN])
    return wp


def _pad_gate_bias(b):
    bp = jnp.zeros((1, 4 * GATE_PAD), jnp.float32)
    for k in range(4):
        bp = bp.at[0, k * GATE_PAD:k * GATE_PAD + HIDDEN].set(
            b[k * HIDDEN:(k + 1) * HIDDEN])
    return bp


@functools.partial(jax.jit, static_argnums=2)
def decoder_forward(z, params, max_length):
    """z: [B, z_size] float32 -> [B, max_length, token_cnt] float32."""
    z = z[:, _zs[0]:_zs[1]]                               # z slice
    B = z.shape[0]

    (w_in, b_in, w_ih, b_ih, w_hh, b_hh, w_out, b_out) = params

    # Weight prep (tiny, one-time XLA ops fused under this jit): transpose to
    # (in,out), pad gates to 128-lane tiles, fold the two LSTM biases,
    # pad vocab dim to 128.
    w_gih = _pad_gate_weight(w_ih)
    w_ghh = _pad_gate_weight(w_hh)
    b_g   = _pad_gate_bias(b_ih + b_hh)
    w_out_p = (jnp.zeros((HIDDEN, VOCAB_PAD), jnp.float32)
               .at[:, :TOKEN_CNT].set(w_out.T))
    b_out_p = (jnp.zeros((1, VOCAB_PAD), jnp.float32)
               .at[0, :TOKEN_CNT].set(b_out))

    args = (z, w_in.T, b_in[None, :], w_gih, w_ghh, b_g, w_out_p, b_out_p)

    vmem = pl.BlockSpec(memory_space=pltpu.MemorySpace.VMEM)
    out2d = pl.pallas_call(
        functools.partial(decoder_kernel,
                          hidden_size=HIDDEN, max_length=max_length),
        out_shape=jax.ShapeDtypeStruct((max_length * B, VOCAB_PAD), jnp.float32),
        in_specs=[vmem] * len(args),
        out_specs=vmem,
    )(*args)

    # time-major [T*B, Vp] -> PyTorch layout [B, T, token_cnt]
    out = out2d.reshape(max_length, B, VOCAB_PAD)
    return jnp.transpose(out, (1, 0, 2))[:, :, :TOKEN_CNT]


# --------------------------- pure-JAX reference ----------------------------
def decoder_reference(z, params, max_length):
    (w_in, b_in, w_ih, b_ih, w_hh, b_hh, w_out, b_out) = params
    z = z[:, _zs[0]:_zs[1]]
    B, H = z.shape[0], HIDDEN
    x = jnp.maximum(z @ w_in.T + b_in, 0.0)
    h = jnp.zeros((B, H), jnp.float32)
    c = jnp.zeros((B, H), jnp.float32)
    outs = []
    for _ in range(max_length):
        gates = x @ w_ih.T + b_ih + h @ w_hh.T + b_hh
        i_g = jax.nn.sigmoid(gates[:, 0 * H:1 * H])
        f_g = jax.nn.sigmoid(gates[:, 1 * H:2 * H])
        g_g = jnp.tanh(      gates[:, 2 * H:3 * H])
        o_g = jax.nn.sigmoid(gates[:, 3 * H:4 * H])
        c = f_g * c + i_g * g_g
        h = o_g * jnp.tanh(c)
        outs.append(jnp.maximum(h, 0.0) @ w_out.T + b_out)
    return jnp.stack(outs, axis=1)


# ------------------------------ param init ---------------------------------
def init_params(key):
    ks = jax.random.split(key, 8)
    def u(k, shape, fan_in):
        bound = 1.0 / jnp.sqrt(fan_in)
        return jax.random.uniform(k, shape, jnp.float32, -bound, bound)
    w_in  = u(ks[0], (HIDDEN, INPUT_SIZE), INPUT_SIZE)        # linear_in.weight
    b_in  = u(ks[1], (HIDDEN,),            INPUT_SIZE)        # linear_in.bias
    w_ih  = u(ks[2], (4 * HIDDEN, HIDDEN), HIDDEN)            # lstm.weight_ih_l0
    b_ih  = u(ks[3], (4 * HIDDEN,),        HIDDEN)            # lstm.bias_ih_l0
    w_hh  = u(ks[4], (4 * HIDDEN, HIDDEN), HIDDEN)            # lstm.weight_hh_l0
    b_hh  = u(ks[5], (4 * HIDDEN,),        HIDDEN)            # lstm.bias_hh_l0
    w_out = u(ks[6], (TOKEN_CNT, HIDDEN),  HIDDEN)            # linear_out.weight
    b_out = u(ks[7], (TOKEN_CNT,),         HIDDEN)            # linear_out.bias
    return (w_in, b_in, w_ih, b_ih, w_hh, b_hh, w_out, b_out)


# --------------------------------- main -------------------------------------
if __name__ == "__main__":
    key = jax.random.PRNGKey(0)
    k_z, k_p = jax.random.split(key)
    z = jax.random.normal(k_z, (BATCH, Z_SIZE), jnp.float32)
    params = init_params(k_p)

    out = decoder_forward(z, params, MAX_LENGTH)
    out = jax.block_until_ready(out)

    ref = decoder_reference(z, params, MAX_LENGTH)
    assert out.shape == (BATCH, MAX_LENGTH, TOKEN_CNT), out.shape
    assert jnp.allclose(out, ref, atol=1e-5, rtol=1e-5), \
        float(jnp.max(jnp.abs(out - ref)))

    print("KERNEL_OK")
</pallas_src>

<mosaic_0001>
module attributes {stable_mosaic.version = 11 : i64} {
  func.func @decoder_kernel(%arg0: memref<2x32xf32, #tpu.memory_space<vmem>>, %arg1: memref<32x32xf32, #tpu.memory_space<vmem>>, %arg2: memref<1x32xf32, #tpu.memory_space<vmem>>, %arg3: memref<32x512xf32, #tpu.memory_space<vmem>>, %arg4: memref<32x512xf32, #tpu.memory_space<vmem>>, %arg5: memref<1x512xf32, #tpu.memory_space<vmem>>, %arg6: memref<32x128xf32, #tpu.memory_space<vmem>>, %arg7: memref<1x128xf32, #tpu.memory_space<vmem>>, %arg8: memref<16x128xf32, #tpu.memory_space<vmem>>) attributes {dimension_semantics = [], scalar_prefetch = 0 : i64, scratch_operands = 0 : i64, tpu.core_type = #tpu.core_type<tc>} {
    %c0 = arith.constant 0 : index
    %c0_0 = arith.constant 0 : index
    %0 = vector.load %arg0[%c0, %c0_0] : memref<2x32xf32, #tpu.memory_space<vmem>>, vector<2x32xf32>
    %c0_1 = arith.constant 0 : index
    %c0_2 = arith.constant 0 : index
    %1 = vector.load %arg1[%c0_1, %c0_2] : memref<32x32xf32, #tpu.memory_space<vmem>>, vector<32x32xf32>
    %cst = arith.constant dense<0.000000e+00> : vector<2x32xf32>
    %2 = tpu.matmul %0, %1, %cst {dimension_numbers = #tpu.dot_dimension_numbers<[1], [0], [0], [1], [0, 0, 1, 1], [], []>} : vector<2x32xf32>, vector<32x32xf32>, vector<2x32xf32> -> vector<2x32xf32>
    %c0_3 = arith.constant 0 : index
    %c0_4 = arith.constant 0 : index
    %3 = vector.load %arg2[%c0_3, %c0_4] : memref<1x32xf32, #tpu.memory_space<vmem>>, vector<1x32xf32>
    %4 = vector.broadcast %3 : vector<1x32xf32> to vector<2x32xf32>
    %5 = arith.addf %2, %4 : vector<2x32xf32>
    %cst_5 = arith.constant 0.000000e+00 : f32
    %6 = vector.broadcast %cst_5 : f32 to vector<2x32xf32>
    %7 = arith.maximumf %5, %6 : vector<2x32xf32>
    %c0_6 = arith.constant 0 : index
    %c0_7 = arith.constant 0 : index
    %8 = vector.load %arg3[%c0_6, %c0_7] : memref<32x512xf32, #tpu.memory_space<vmem>>, vector<32x512xf32>
    %cst_8 = arith.constant dense<0.000000e+00> : vector<2x512xf32>
    %9 = tpu.matmul %7, %8, %cst_8 {dimension_numbers = #tpu.dot_dimension_numbers<[1], [0], [0], [1], [0, 0, 1, 1], [], []>} : vector<2x32xf32>, vector<32x512xf32>, vector<2x512xf32> -> vector<2x512xf32>
    %c0_9 = arith.constant 0 : index
    %c0_10 = arith.constant 0 : index
    %10 = vector.load %arg5[%c0_9, %c0_10] : memref<1x512xf32, #tpu.memory_space<vmem>>, vector<1x512xf32>
    %11 = vector.broadcast %10 : vector<1x512xf32> to vector<2x512xf32>
    %12 = arith.addf %9, %11 : vector<2x512xf32>
    %c0_11 = arith.constant 0 : index
    %c0_12 = arith.constant 0 : index
    %13 = vector.load %arg4[%c0_11, %c0_12] : memref<32x512xf32, #tpu.memory_space<vmem>>, vector<32x512xf32>
    %cst_13 = arith.constant 0.000000e+00 : f32
    %14 = vector.broadcast %cst_13 : f32 to vector<2x32xf32>
    %cst_14 = arith.constant 0.000000e+00 : f32
    %15 = vector.broadcast %cst_14 : f32 to vector<2x32xf32>
    %cst_15 = arith.constant dense<0.000000e+00> : vector<2x512xf32>
    %16 = tpu.matmul %14, %13, %cst_15 {dimension_numbers = #tpu.dot_dimension_numbers<[1], [0], [0], [1], [0, 0, 1, 1], [], []>} : vector<2x32xf32>, vector<32x512xf32>, vector<2x512xf32> -> vector<2x512xf32>
    %17 = arith.addf %12, %16 : vector<2x512xf32>
    %18 = vector.extract_strided_slice %17 {offsets = [0, 0], sizes = [2, 32], strides = [1, 1]} : vector<2x512xf32> to vector<2x32xf32>
    %19 = arith.negf %18 : vector<2x32xf32>
    %20 = math.exp %19 : vector<2x32xf32>
    %cst_16 = arith.constant 1.000000e+00 : f32
    %21 = vector.broadcast %cst_16 : f32 to vector<2x32xf32>
    %22 = arith.addf %21, %20 : vector<2x32xf32>
    %23 = arith.divf %21, %22 : vector<2x32xf32>
    %24 = vector.extract_strided_slice %17 {offsets = [0, 128], sizes = [2, 32], strides = [1, 1]} : vector<2x512xf32> to vector<2x32xf32>
    %25 = arith.negf %24 : vector<2x32xf32>
    %26 = math.exp %25 : vector<2x32xf32>
    %cst_17 = arith.constant 1.000000e+00 : f32
    %27 = vector.broadcast %cst_17 : f32 to vector<2x32xf32>
    %28 = arith.addf %27, %26 : vector<2x32xf32>
    %29 = arith.divf %27, %28 : vector<2x32xf32>
    %30 = vector.extract_strided_slice %17 {offsets = [0, 256], sizes = [2, 32], strides = [1, 1]} : vector<2x512xf32> to vector<2x32xf32>
    %31 = math.tanh %30 : vector<2x32xf32>
    %32 = vector.extract_strided_slice %17 {offsets = [0, 384], sizes = [2, 32], strides = [1, 1]} : vector<2x512xf32> to vector<2x32xf32>
    %33 = arith.negf %32 : vector<2x32xf32>
    %34 = math.exp %33 : vector<2x32xf32>
    %cst_18 = arith.constant 1.000000e+00 : f32
    %35 = vector.broadcast %cst_18 : f32 to vector<2x32xf32>
    %36 = arith.addf %35, %34 : vector<2x32xf32>
    %37 = arith.divf %35, %36 : vector<2x32xf32>
    %38 = arith.mulf %29, %15 : vector<2x32xf32>
    %39 = arith.mulf %23, %31 : vector<2x32xf32>
    %40 = arith.addf %38, %39 : vector<2x32xf32>
    %41 = math.tanh %40 : vector<2x32xf32>
    %42 = arith.mulf %37, %41 : vector<2x32xf32>
    %cst_19 = arith.constant 0.000000e+00 : f32
    %43 = vector.broadcast %cst_19 : f32 to vector<2x32xf32>
    %44 = arith.maximumf %42, %43 : vector<2x32xf32>
    %cst_20 = arith.constant dense<0.000000e+00> : vector<2x512xf32>
    %45 = tpu.matmul %42, %13, %cst_20 {dimension_numbers = #tpu.dot_dimension_numbers<[1], [0], [0], [1], [0, 0, 1, 1], [], []>} : vector<2x32xf32>, vector<32x512xf32>, vector<2x512xf32> -> vector<2x512xf32>
    %46 = arith.addf %12, %45 : vector<2x512xf32>
    %47 = vector.extract_strided_slice %46 {offsets = [0, 0], sizes = [2, 32], strides = [1, 1]} : vector<2x512xf32> to vector<2x32xf32>
    %48 = arith.negf %47 : vector<2x32xf32>
    %49 = math.exp %48 : vector<2x32xf32>
    %cst_21 = arith.constant 1.000000e+00 : f32
    %50 = vector.broadcast %cst_21 : f32 to vector<2x32xf32>
    %51 = arith.addf %50, %49 : vector<2x32xf32>
    %52 = arith.divf %50, %51 : vector<2x32xf32>
    %53 = vector.extract_strided_slice %46 {offsets = [0, 128], sizes = [2, 32], strides = [1, 1]} : vector<2x512xf32> to vector<2x32xf32>
    %54 = arith.negf %53 : vector<2x32xf32>
    %55 = math.exp %54 : vector<2x32xf32>
    %cst_22 = arith.constant 1.000000e+00 : f32
    %56 = vector.broadcast %cst_22 : f32 to vector<2x32xf32>
    %57 = arith.addf %56, %55 : vector<2x32xf32>
    %58 = arith.divf %56, %57 : vector<2x32xf32>
    %59 = vector.extract_strided_slice %46 {offsets = [0, 256], sizes = [2, 32], strides = [1, 1]} : vector<2x512xf32> to vector<2x32xf32>
    %60 = math.tanh %59 : vector<2x32xf32>
    %61 = vector.extract_strided_slice %46 {offsets = [0, 384], sizes = [2, 32], strides = [1, 1]} : vector<2x512xf32> to vector<2x32xf32>
    %62 = arith.negf %61 : vector<2x32xf32>
    %63 = math.exp %62 : vector<2x32xf32>
    %cst_23 = arith.constant 1.000000e+00 : f32
    %64 = vector.broadcast %cst_23 : f32 to vector<2x32xf32>
    %65 = arith.addf %64, %63 : vector<2x32xf32>
    %66 = arith.divf %64, %65 : vector<2x32xf32>
    %67 = arith.mulf %58, %40 : vector<2x32xf32>
    %68 = arith.mulf %52, %60 : vector<2x32xf32>
    %69 = arith.addf %67, %68 : vector<2x32xf32>
    %70 = math.tanh %69 : vector<2x32xf32>
    %71 = arith.mulf %66, %70 : vector<2x32xf32>
    %cst_24 = arith.constant 0.000000e+00 : f32
    %72 = vector.broadcast %cst_24 : f32 to vector<2x32xf32>
    %73 = arith.maximumf %71, %72 : vector<2x32xf32>
    %cst_25 = arith.constant dense<0.000000e+00> : vector<2x512xf32>
    %74 = tpu.matmul %71, %13, %cst_25 {dimension_numbers = #tpu.dot_dimension_numbers<[1], [0], [0], [1], [0, 0, 1, 1], [], []>} : vector<2x32xf32>, vector<32x512xf32>, vector<2x512xf32> -> vector<2x512xf32>
    %75 = arith.addf %12, %74 : vector<2x512xf32>
    %76 = vector.extract_strided_slice %75 {offsets = [0, 0], sizes = [2, 32], strides = [1, 1]} : vector<2x512xf32> to vector<2x32xf32>
    %77 = arith.negf %76 : vector<2x32xf32>
    %78 = math.exp %77 : vector<2x32xf32>
    %cst_26 = arith.constant 1.000000e+00 : f32
    %79 = vector.broadcast %cst_26 : f32 to vector<2x32xf32>
    %80 = arith.addf %79, %78 : vector<2x32xf32>
    %81 = arith.divf %79, %80 : vector<2x32xf32>
    %82 = vector.extract_strided_slice %75 {offsets = [0, 128], sizes = [2, 32], strides = [1, 1]} : vector<2x512xf32> to vector<2x32xf32>
    %83 = arith.negf %82 : vector<2x32xf32>
    %84 = math.exp %83 : vector<2x32xf32>
    %cst_27 = arith.constant 1.000000e+00 : f32
    %85 = vector.broadcast %cst_27 : f32 to vector<2x32xf32>
    %86 = arith.addf %85, %84 : vector<2x32xf32>
    %87 = arith.divf %85, %86 : vector<2x32xf32>
    %88 = vector.extract_strided_slice %75 {offsets = [0, 256], sizes = [2, 32], strides = [1, 1]} : vector<2x512xf32> to vector<2x32xf32>
    %89 = math.tanh %88 : vector<2x32xf32>
    %90 = vector.extract_strided_slice %75 {offsets = [0, 384], sizes = [2, 32], strides = [1, 1]} : vector<2x512xf32> to vector<2x32xf32>
    %91 = arith.negf %90 : vector<2x32xf32>
    %92 = math.exp %91 : vector<2x32xf32>
    %cst_28 = arith.constant 1.000000e+00 : f32
    %93 = vector.broadcast %cst_28 : f32 to vector<2x32xf32>
    %94 = arith.addf %93, %92 : vector<2x32xf32>
    %95 = arith.divf %93, %94 : vector<2x32xf32>
    %96 = arith.mulf %87, %69 : vector<2x32xf32>
    %97 = arith.mulf %81, %89 : vector<2x32xf32>
    %98 = arith.addf %96, %97 : vector<2x32xf32>
    %99 = math.tanh %98 : vector<2x32xf32>
    %100 = arith.mulf %95, %99 : vector<2x32xf32>
    %cst_29 = arith.constant 0.000000e+00 : f32
    %101 = vector.broadcast %cst_29 : f32 to vector<2x32xf32>
    %102 = arith.maximumf %100, %101 : vector<2x32xf32>
    %cst_30 = arith.constant dense<0.000000e+00> : vector<2x512xf32>
    %103 = tpu.matmul %100, %13, %cst_30 {dimension_numbers = #tpu.dot_dimension_numbers<[1], [0], [0], [1], [0, 0, 1, 1], [], []>} : vector<2x32xf32>, vector<32x512xf32>, vector<2x512xf32> -> vector<2x512xf32>
    %104 = arith.addf %12, %103 : vector<2x512xf32>
    %105 = vector.extract_strided_slice %104 {offsets = [0, 0], sizes = [2, 32], strides = [1, 1]} : vector<2x512xf32> to vector<2x32xf32>
    %106 = arith.negf %105 : vector<2x32xf32>
    %107 = math.exp %106 : vector<2x32xf32>
    %cst_31 = arith.constant 1.000000e+00 : f32
    %108 = vector.broadcast %cst_31 : f32 to vector<2x32xf32>
    %109 = arith.addf %108, %107 : vector<2x32xf32>
    %110 = arith.divf %108, %109 : vector<2x32xf32>
    %111 = vector.extract_strided_slice %104 {offsets = [0, 128], sizes = [2, 32], strides = [1, 1]} : vector<2x512xf32> to vector<2x32xf32>
    %112 = arith.negf %111 : vector<2x32xf32>
    %113 = math.exp %112 : vector<2x32xf32>
    %cst_32 = arith.constant 1.000000e+00 : f32
    %114 = vector.broadcast %cst_32 : f32 to vector<2x32xf32>
    %115 = arith.addf %114, %113 : vector<2x32xf32>
    %116 = arith.divf %114, %115 : vector<2x32xf32>
    %117 = vector.extract_strided_slice %104 {offsets = [0, 256], sizes = [2, 32], strides = [1, 1]} : vector<2x512xf32> to vector<2x32xf32>
    %118 = math.tanh %117 : vector<2x32xf32>
    %119 = vector.extract_strided_slice %104 {offsets = [0, 384], sizes = [2, 32], strides = [1, 1]} : vector<2x512xf32> to vector<2x32xf32>
    %120 = arith.negf %119 : vector<2x32xf32>
    %121 = math.exp %120 : vector<2x32xf32>
    %cst_33 = arith.constant 1.000000e+00 : f32
    %122 = vector.broadcast %cst_33 : f32 to vector<2x32xf32>
    %123 = arith.addf %122, %121 : vector<2x32xf32>
    %124 = arith.divf %122, %123 : vector<2x32xf32>
    %125 = arith.mulf %116, %98 : vector<2x32xf32>
    %126 = arith.mulf %110, %118 : vector<2x32xf32>
    %127 = arith.addf %125, %126 : vector<2x32xf32>
    %128 = math.tanh %127 : vector<2x32xf32>
    %129 = arith.mulf %124, %128 : vector<2x32xf32>
    %cst_34 = arith.constant 0.000000e+00 : f32
    %130 = vector.broadcast %cst_34 : f32 to vector<2x32xf32>
    %131 = arith.maximumf %129, %130 : vector<2x32xf32>
    %cst_35 = arith.constant dense<0.000000e+00> : vector<2x512xf32>
    %132 = tpu.matmul %129, %13, %cst_35 {dimension_numbers = #tpu.dot_dimension_numbers<[1], [0], [0], [1], [0, 0, 1, 1], [], []>} : vector<2x32xf32>, vector<32x512xf32>, vector<2x512xf32> -> vector<2x512xf32>
    %133 = arith.addf %12, %132 : vector<2x512xf32>
    %134 = vector.extract_strided_slice %133 {offsets = [0, 0], sizes = [2, 32], strides = [1, 1]} : vector<2x512xf32> to vector<2x32xf32>
    %135 = arith.negf %134 : vector<2x32xf32>
    %136 = math.exp %135 : vector<2x32xf32>
    %cst_36 = arith.constant 1.000000e+00 : f32
    %137 = vector.broadcast %cst_36 : f32 to vector<2x32xf32>
    %138 = arith.addf %137, %136 : vector<2x32xf32>
    %139 = arith.divf %137, %138 : vector<2x32xf32>
    %140 = vector.extract_strided_slice %133 {offsets = [0, 128], sizes = [2, 32], strides = [1, 1]} : vector<2x512xf32> to vector<2x32xf32>
    %141 = arith.negf %140 : vector<2x32xf32>
    %142 = math.exp %141 : vector<2x32xf32>
    %cst_37 = arith.constant 1.000000e+00 : f32
    %143 = vector.broadcast %cst_37 : f32 to vector<2x32xf32>
    %144 = arith.addf %143, %142 : vector<2x32xf32>
    %145 = arith.divf %143, %144 : vector<2x32xf32>
    %146 = vector.extract_strided_slice %133 {offsets = [0, 256], sizes = [2, 32], strides = [1, 1]} : vector<2x512xf32> to vector<2x32xf32>
    %147 = math.tanh %146 : vector<2x32xf32>
    %148 = vector.extract_strided_slice %133 {offsets = [0, 384], sizes = [2, 32], strides = [1, 1]} : vector<2x512xf32> to vector<2x32xf32>
    %149 = arith.negf %148 : vector<2x32xf32>
    %150 = math.exp %149 : vector<2x32xf32>
    %cst_38 = arith.constant 1.000000e+00 : f32
    %151 = vector.broadcast %cst_38 : f32 to vector<2x32xf32>
    %152 = arith.addf %151, %150 : vector<2x32xf32>
    %153 = arith.divf %151, %152 : vector<2x32xf32>
    %154 = arith.mulf %145, %127 : vector<2x32xf32>
    %155 = arith.mulf %139, %147 : vector<2x32xf32>
    %156 = arith.addf %154, %155 : vector<2x32xf32>
    %157 = math.tanh %156 : vector<2x32xf32>
    %158 = arith.mulf %153, %157 : vector<2x32xf32>
    %cst_39 = arith.constant 0.000000e+00 : f32
    %159 = vector.broadcast %cst_39 : f32 to vector<2x32xf32>
    %160 = arith.maximumf %158, %159 : vector<2x32xf32>
    %cst_40 = arith.constant dense<0.000000e+00> : vector<2x512xf32>
    %161 = tpu.matmul %158, %13, %cst_40 {dimension_numbers = #tpu.dot_dimension_numbers<[1], [0], [0], [1], [0, 0, 1, 1], [], []>} : vector<2x32xf32>, vector<32x512xf32>, vector<2x512xf32> -> vector<2x512xf32>
    %162 = arith.addf %12, %161 : vector<2x512xf32>
    %163 = vector.extract_strided_slice %162 {offsets = [0, 0], sizes = [2, 32], strides = [1, 1]} : vector<2x512xf32> to vector<2x32xf32>
    %164 = arith.negf %163 : vector<2x32xf32>
    %165 = math.exp %164 : vector<2x32xf32>
    %cst_41 = arith.constant 1.000000e+00 : f32
    %166 = vector.broadcast %cst_41 : f32 to vector<2x32xf32>
    %167 = arith.addf %166, %165 : vector<2x32xf32>
    %168 = arith.divf %166, %167 : vector<2x32xf32>
    %169 = vector.extract_strided_slice %162 {offsets = [0, 128], sizes = [2, 32], strides = [1, 1]} : vector<2x512xf32> to vector<2x32xf32>
    %170 = arith.negf %169 : vector<2x32xf32>
    %171 = math.exp %170 : vector<2x32xf32>
    %cst_42 = arith.constant 1.000000e+00 : f32
    %172 = vector.broadcast %cst_42 : f32 to vector<2x32xf32>
    %173 = arith.addf %172, %171 : vector<2x32xf32>
    %174 = arith.divf %172, %173 : vector<2x32xf32>
    %175 = vector.extract_strided_slice %162 {offsets = [0, 256], sizes = [2, 32], strides = [1, 1]} : vector<2x512xf32> to vector<2x32xf32>
    %176 = math.tanh %175 : vector<2x32xf32>
    %177 = vector.extract_strided_slice %162 {offsets = [0, 384], sizes = [2, 32], strides = [1, 1]} : vector<2x512xf32> to vector<2x32xf32>
    %178 = arith.negf %177 : vector<2x32xf32>
    %179 = math.exp %178 : vector<2x32xf32>
    %cst_43 = arith.constant 1.000000e+00 : f32
    %180 = vector.broadcast %cst_43 : f32 to vector<2x32xf32>
    %181 = arith.addf %180, %179 : vector<2x32xf32>
    %182 = arith.divf %180, %181 : vector<2x32xf32>
    %183 = arith.mulf %174, %156 : vector<2x32xf32>
    %184 = arith.mulf %168, %176 : vector<2x32xf32>
    %185 = arith.addf %183, %184 : vector<2x32xf32>
    %186 = math.tanh %185 : vector<2x32xf32>
    %187 = arith.mulf %182, %186 : vector<2x32xf32>
    %cst_44 = arith.constant 0.000000e+00 : f32
    %188 = vector.broadcast %cst_44 : f32 to vector<2x32xf32>
    %189 = arith.maximumf %187, %188 : vector<2x32xf32>
    %cst_45 = arith.constant dense<0.000000e+00> : vector<2x512xf32>
    %190 = tpu.matmul %187, %13, %cst_45 {dimension_numbers = #tpu.dot_dimension_numbers<[1], [0], [0], [1], [0, 0, 1, 1], [], []>} : vector<2x32xf32>, vector<32x512xf32>, vector<2x512xf32> -> vector<2x512xf32>
    %191 = arith.addf %12, %190 : vector<2x512xf32>
    %192 = vector.extract_strided_slice %191 {offsets = [0, 0], sizes = [2, 32], strides = [1, 1]} : vector<2x512xf32> to vector<2x32xf32>
    %193 = arith.negf %192 : vector<2x32xf32>
    %194 = math.exp %193 : vector<2x32xf32>
    %cst_46 = arith.constant 1.000000e+00 : f32
    %195 = vector.broadcast %cst_46 : f32 to vector<2x32xf32>
    %196 = arith.addf %195, %194 : vector<2x32xf32>
    %197 = arith.divf %195, %196 : vector<2x32xf32>
    %198 = vector.extract_strided_slice %191 {offsets = [0, 128], sizes = [2, 32], strides = [1, 1]} : vector<2x512xf32> to vector<2x32xf32>
    %199 = arith.negf %198 : vector<2x32xf32>
    %200 = math.exp %199 : vector<2x32xf32>
    %cst_47 = arith.constant 1.000000e+00 : f32
    %201 = vector.broadcast %cst_47 : f32 to vector<2x32xf32>
    %202 = arith.addf %201, %200 : vector<2x32xf32>
    %203 = arith.divf %201, %202 : vector<2x32xf32>
    %204 = vector.extract_strided_slice %191 {offsets = [0, 256], sizes = [2, 32], strides = [1, 1]} : vector<2x512xf32> to vector<2x32xf32>
    %205 = math.tanh %204 : vector<2x32xf32>
    %206 = vector.extract_strided_slice %191 {offsets = [0, 384], sizes = [2, 32], strides = [1, 1]} : vector<2x512xf32> to vector<2x32xf32>
    %207 = arith.negf %206 : vector<2x32xf32>
    %208 = math.exp %207 : vector<2x32xf32>
    %cst_48 = arith.constant 1.000000e+00 : f32
    %209 = vector.broadcast %cst_48 : f32 to vector<2x32xf32>
    %210 = arith.addf %209, %208 : vector<2x32xf32>
    %211 = arith.divf %209, %210 : vector<2x32xf32>
    %212 = arith.mulf %203, %185 : vector<2x32xf32>
    %213 = arith.mulf %197, %205 : vector<2x32xf32>
    %214 = arith.addf %212, %213 : vector<2x32xf32>
    %215 = math.tanh %214 : vector<2x32xf32>
    %216 = arith.mulf %211, %215 : vector<2x32xf32>
    %cst_49 = arith.constant 0.000000e+00 : f32
    %217 = vector.broadcast %cst_49 : f32 to vector<2x32xf32>
    %218 = arith.maximumf %216, %217 : vector<2x32xf32>
    %cst_50 = arith.constant dense<0.000000e+00> : vector<2x512xf32>
    %219 = tpu.matmul %216, %13, %cst_50 {dimension_numbers = #tpu.dot_dimension_numbers<[1], [0], [0], [1], [0, 0, 1, 1], [], []>} : vector<2x32xf32>, vector<32x512xf32>, vector<2x512xf32> -> vector<2x512xf32>
    %220 = arith.addf %12, %219 : vector<2x512xf32>
    %221 = vector.extract_strided_slice %220 {offsets = [0, 0], sizes = [2, 32], strides = [1, 1]} : vector<2x512xf32> to vector<2x32xf32>
    %222 = arith.negf %221 : vector<2x32xf32>
    %223 = math.exp %222 : vector<2x32xf32>
    %cst_51 = arith.constant 1.000000e+00 : f32
    %224 = vector.broadcast %cst_51 : f32 to vector<2x32xf32>
    %225 = arith.addf %224, %223 : vector<2x32xf32>
    %226 = arith.divf %224, %225 : vector<2x32xf32>
    %227 = vector.extract_strided_slice %220 {offsets = [0, 128], sizes = [2, 32], strides = [1, 1]} : vector<2x512xf32> to vector<2x32xf32>
    %228 = arith.negf %227 : vector<2x32xf32>
    %229 = math.exp %228 : vector<2x32xf32>
    %cst_52 = arith.constant 1.000000e+00 : f32
    %230 = vector.broadcast %cst_52 : f32 to vector<2x32xf32>
    %231 = arith.addf %230, %229 : vector<2x32xf32>
    %232 = arith.divf %230, %231 : vector<2x32xf32>
    %233 = vector.extract_strided_slice %220 {offsets = [0, 256], sizes = [2, 32], strides = [1, 1]} : vector<2x512xf32> to vector<2x32xf32>
    %234 = math.tanh %233 : vector<2x32xf32>
    %235 = vector.extract_strided_slice %220 {offsets = [0, 384], sizes = [2, 32], strides = [1, 1]} : vector<2x512xf32> to vector<2x32xf32>
    %236 = arith.negf %235 : vector<2x32xf32>
    %237 = math.exp %236 : vector<2x32xf32>
    %cst_53 = arith.constant 1.000000e+00 : f32
    %238 = vector.broadcast %cst_53 : f32 to vector<2x32xf32>
    %239 = arith.addf %238, %237 : vector<2x32xf32>
    %240 = arith.divf %238, %239 : vector<2x32xf32>
    %241 = arith.mulf %232, %214 : vector<2x32xf32>
    %242 = arith.mulf %226, %234 : vector<2x32xf32>
    %243 = arith.addf %241, %242 : vector<2x32xf32>
    %244 = math.tanh %243 : vector<2x32xf32>
    %245 = arith.mulf %240, %244 : vector<2x32xf32>
    %cst_54 = arith.constant 0.000000e+00 : f32
    %246 = vector.broadcast %cst_54 : f32 to vector<2x32xf32>
    %247 = arith.maximumf %245, %246 : vector<2x32xf32>
    %248 = tpu.concatenate %44, %73, %102, %131, %160, %189, %218, %247 in 0 : vector<2x32xf32>, vector<2x32xf32>, vector<2x32xf32>, vector<2x32xf32>, vector<2x32xf32>, vector<2x32xf32>, vector<2x32xf32>, vector<2x32xf32> -> vector<16x32xf32>
    %c0_55 = arith.constant 0 : index
    %c0_56 = arith.constant 0 : index
    %249 = vector.load %arg6[%c0_55, %c0_56] : memref<32x128xf32, #tpu.memory_space<vmem>>, vector<32x128xf32>
    %cst_57 = arith.constant dense<0.000000e+00> : vector<16x128xf32>
    %250 = tpu.matmul %248, %249, %cst_57 {dimension_numbers = #tpu.dot_dimension_numbers<[1], [0], [0], [1], [0, 0, 1, 1], [], []>} : vector<16x32xf32>, vector<32x128xf32>, vector<16x128xf32> -> vector<16x128xf32>
    %c0_58 = arith.constant 0 : index
    %c0_59 = arith.constant 0 : index
    %251 = vector.load %arg7[%c0_58, %c0_59] : memref<1x128xf32, #tpu.memory_space<vmem>>, vector<1x128xf32>
    %252 = vector.broadcast %251 : vector<1x128xf32> to vector<16x128xf32>
    %253 = arith.addf %250, %252 : vector<16x128xf32>
    %c0_60 = arith.constant 0 : index
    %c0_61 = arith.constant 0 : index
    %254 = vector.load %arg8[%c0_60, %c0_61] : memref<16x128xf32, #tpu.memory_space<vmem>>, vector<16x128xf32>
    tpu.vector_store %arg8[%c0_60, %c0_61], %253 {strides = array<i32>} : memref<16x128xf32, #tpu.memory_space<vmem>>, vector<16x128xf32>,
    return
  }
}

</mosaic_0001>

<llo_original>
// kernel: decoder_forward.1
$region0: #{decoder_forward.1}
  #allocation0 [shape = 'u32[]', space=smem, size = 0x4, offset = 0x4, fixed_abs, tag = 'smem constant byte address 0x4 - core index']
  #allocation1 [shape = 'u32[144,128]{1,0:T(1,128)}', space=vmem, size = 0x12000, scoped, tag = 'internal scratch']
  %s0 = inlined_call_operand.vmem [shape: f32[2,32], index: 0, kind: input, shape index: {}]
  %s1 = inlined_call_operand.vmem [shape: f32[32,32], index: 1, kind: input, shape index: {}]
  %s2 = inlined_call_operand.vmem [shape: f32[1,32], index: 2, kind: input, shape index: {}]
  %s3 = inlined_call_operand.vmem [shape: f32[32,512], index: 3, kind: input, shape index: {}]
  %s4 = inlined_call_operand.vmem [shape: f32[32,512], index: 4, kind: input, shape index: {}]
  %s5 = inlined_call_operand.vmem [shape: f32[1,512], index: 5, kind: input, shape index: {}]
  %s6 = inlined_call_operand.vmem [shape: f32[32,128], index: 6, kind: input, shape index: {}]
  %s7 = inlined_call_operand.vmem [shape: f32[1,128], index: 7, kind: input, shape index: {}]
  %s8 = inlined_call_operand.vmem [shape: f32[16,128], index: 8, kind: output, shape index: {}]
  %s9 = sld [smem:[#allocation0]]
  $region42: #{decoder_forward.1} parent=0
    _
  %s11 = ssub.s32 1, %s9
  %s12 = scalar_select 0, %s11, %s9
  // Predicated region
  $region2: #{decoder_forward.1} parent=0 // pred_check
    _
  $region3: #{decoder_forward.1} parent=0 // pred_check_branch
    %14 = sbr.rel (0) target = $region5
  $region4: #{decoder_forward.1} parent=0 // pred_region
    _
  $region5: #{decoder_forward.1} parent=0 // pred_fallthru
    _
  // Predicated region
  $region6: #{decoder_forward.1} parent=0 // pred_check
    _
  $region7: #{decoder_forward.1} parent=0 // pred_check_branch
    %16 = sbr.rel (0) target = $region9
  $region8: #{decoder_forward.1} parent=0 // pred_region
    _
  $region9: #{decoder_forward.1} parent=0 // pred_fallthru
    _
  // Predicated region
  $region10: #{decoder_forward.1} parent=0 // pred_check
    _
  $region11: #{decoder_forward.1} parent=0 // pred_check_branch
    %18 = sbr.rel (0) target = $region13
  $region12: #{decoder_forward.1} parent=0 // pred_region
    _
  $region13: #{decoder_forward.1} parent=0 // pred_fallthru
    _
  // Predicated region
  $region14: #{decoder_forward.1} parent=0 // pred_check
    _
  $region15: #{decoder_forward.1} parent=0 // pred_check_branch
    %20 = sbr.rel (0) target = $region17
  $region16: #{decoder_forward.1} parent=0 // pred_region
    _
  $region17: #{decoder_forward.1} parent=0 // pred_fallthru
    _
  // Predicated region
  $region18: #{decoder_forward.1} parent=0 // pred_check
    _
  $region19: #{decoder_forward.1} parent=0 // pred_check_branch
    %22 = sbr.rel (0) target = $region21
  $region20: #{decoder_forward.1} parent=0 // pred_region
    _
  $region21: #{decoder_forward.1} parent=0 // pred_fallthru
    _
  // Predicated region
  $region22: #{decoder_forward.1} parent=0 // pred_check
    _
  $region23: #{decoder_forward.1} parent=0 // pred_check_branch
    %24 = sbr.rel (0) target = $region25
  $region24: #{decoder_forward.1} parent=0 // pred_region
    _
  $region25: #{decoder_forward.1} parent=0 // pred_fallthru
    _
  // Predicated region
  $region26: #{decoder_forward.1} parent=0 // pred_check
    _
  $region27: #{decoder_forward.1} parent=0 // pred_check_branch
    %26 = sbr.rel (0) target = $region29
  $region28: #{decoder_forward.1} parent=0 // pred_region
    _
  $region29: #{decoder_forward.1} parent=0 // pred_fallthru
    _
  // Predicated region
  $region30: #{decoder_forward.1} parent=0 // pred_check
    _
  $region31: #{decoder_forward.1} parent=0 // pred_check_branch
    %28 = sbr.rel (0) target = $region33
  $region32: #{decoder_forward.1} parent=0 // pred_region
    _
  $region33: #{decoder_forward.1} parent=0 // pred_fallthru
    _
  %v29 = vld [vmem:[%s0] sm:$0x3]
  %v30 = vld [vmem:[%s1] sm:$0xff]
  %v31 = vld [vmem:[%s1 + $0x8] sm:$0xff]
  %v32 = vld [vmem:[%s1 + $0x10] sm:$0xff]
  %v33 = vld [vmem:[%s1 + $0x18] sm:$0xff]
  %v34 = vld [vmem:[%s2] sm:$0x1]
  %v36 = vlaneseq
  %v37 = vshrl.u32 %v36, 7
  %v38 = vsub.s32 0, %v37
  %v39 = vrot.slane %v34, %v38
  %vm41 = vcmask 261120
  %v43 = vsel %vm41, %v29, 0
  %45 = vmatprep.subr.mxu0 0.0
  %46 = vmatpush1.msra.mxu0 %v30
  %47 = vmatprep.subr.mxu0 0.0
  %48 = vmatpush1.msra.mxu0 %v31
  %49 = vmatprep.subr.mxu0 0.0
  %50 = vmatpush1.msra.mxu0 %v32
  %51 = vmatprep.subr.mxu0 0.0
  %52 = vmatpush1.msra.mxu0 %v33
  %53 = vmatprep.subr.mxu0 0.0
  %54 = vmatpush1.msra.mxu0 0.0
  %55 = vmatprep.subr.mxu0 0.0
  %56 = vmatpush1.msra.mxu0 0.0
  %57 = vmatprep.subr.mxu0 0.0
  %58 = vmatpush1.msra.mxu0 0.0
  %59 = vmatprep.subr.mxu0 0.0
  %60 = vmatpush1.msra.mxu0 0.0
  %61 = vmatprep.subr.mxu0 0.0
  %62 = vmatpush1.msra.mxu0 0.0
  %63 = vmatprep.subr.mxu0 0.0
  %64 = vmatpush1.msra.mxu0 0.0
  %65 = vmatprep.subr.mxu0 0.0
  %66 = vmatpush1.msra.mxu0 0.0
  %67 = vmatprep.subr.mxu0 0.0
  %68 = vmatpush1.msra.mxu0 0.0
  %69 = vmatprep.subr.mxu0 0.0
  %70 = vmatpush1.msra.mxu0 0.0
  %71 = vmatprep.subr.mxu0 0.0
  %72 = vmatpush1.msra.mxu0 0.0
  %73 = vmatprep.subr.mxu0 0.0
  %74 = vmatpush1.msra.mxu0 0.0
  %75 = vmatprep.subr.mxu0 0.0
  %76 = vmatpush1.msra.mxu0 0.0
  %77 = vmatprep.subr.mxu0 0.0
  %78 = vmatpush1.msra.mxu0 0.0
  %79 = vmatprep.subr.mxu0 0.0
  %80 = vmatpush1.msra.mxu0 0.0
  %81 = vmatprep.subr.mxu0 0.0
  %82 = vmatpush1.msra.mxu0 0.0
  %83 = vmatprep.subr.mxu0 0.0
  %84 = vmatpush1.msra.mxu0 0.0
  %85 = vmatprep.subr.mxu0 0.0
  %86 = vmatpush1.msra.mxu0 0.0
  %87 = vmatprep.subr.mxu0 0.0
  %88 = vmatpush1.msra.mxu0 0.0
  %89 = vmatprep.subr.mxu0 0.0
  %90 = vmatpush1.msra.mxu0 0.0
  %91 = vmatprep.subr.mxu0 0.0
  %92 = vmatpush1.msra.mxu0 0.0
  %93 = vmatprep.subr.mxu0 0.0
  %94 = vmatpush1.msra.mxu0 0.0
  %95 = vmatprep.subr.mxu0 0.0
  %96 = vmatpush1.msra.mxu0 0.0
  %97 = vmatprep.subr.mxu0 0.0
  %98 = vmatpush1.msra.mxu0 0.0
  %99 = vmatprep.subr.mxu0 0.0
  %100 = vmatpush1.msra.mxu0 0.0
  %101 = vmatprep.subr.mxu0 0.0
  %102 = vmatpush1.msra.mxu0 0.0
  %103 = vmatprep.subr.mxu0 0.0
  %104 = vmatpush1.msra.mxu0 0.0
  %105 = vmatprep.subr.mxu0 0.0
  %106 = vmatpush1.msra.mxu0 0.0
  %107 = vmatprep.subr.mxu0 0.0
  %108 = vmatpush1.msra.mxu0 0.0
  %109 = vmatprep.mubr.f32.mxu0 0.0
  %110 = vmatmul.mubr.f32.gmra.mrb[0].mxu0 %v43
  %v111 = vpop.f32.mrb[0].mxu0
  %v112 = vadd.f32 %v39, %v111
  %v113 = vpop.f32.mrb[0].mxu0
  %114 = vdwg.mxu0
  %v115 = vmax.f32 %v112, 0.0
  %v116 = vld [vmem:[%s3] sm:$0xff]
  %v117 = vld [vmem:[%s3 + $0x8] sm:$0xff]
  %v118 = vld [vmem:[%s3 + $0x10] sm:$0xff]
  %v119 = vld [vmem:[%s3 + $0x18] sm:$0xff]
  %v120 = vld [vmem:[%s3 + $0x20] sm:$0xff]
  %v121 = vld [vmem:[%s3 + $0x28] sm:$0xff]
  %v122 = vld [vmem:[%s3 + $0x30] sm:$0xff]
  %v123 = vld [vmem:[%s3 + $0x38] sm:$0xff]
  %v124 = vld [vmem:[%s3 + $0x40] sm:$0xff]
  %v125 = vld [vmem:[%s3 + $0x48] sm:$0xff]
  %v126 = vld [vmem:[%s3 + $0x50] sm:$0xff]
  %v127 = vld [vmem:[%s3 + $0x58] sm:$0xff]
  %v128 = vld [vmem:[%s3 + $0x60] sm:$0xff]
  %v129 = vld [vmem:[%s3 + $0x68] sm:$0xff]
  %v130 = vld [vmem:[%s3 + $0x70] sm:$0xff]
  %v131 = vld [vmem:[%s3 + $0x78] sm:$0xff]
  %v132 = vld [vmem:[%s5] sm:$0xf]
  %v134 = vlaneseq
  %v135 = vshrl.u32 %v134, 7
  %v136 = vsub.s32 0, %v135
  %v137 = vrot.slane %v132, %v136
  %v138 = vlaneseq
  %v139 = vshrl.u32 %v138, 7
  %v140 = vsub.s32 1, %v139
  %v141 = vrot.slane %v132, %v140
  %v142 = vlaneseq
  %v143 = vshrl.u32 %v142, 7
  %v144 = vsub.s32 2, %v143
  %v145 = vrot.slane %v132, %v144
  %v146 = vlaneseq
  %v147 = vshrl.u32 %v146, 7
  %v148 = vsub.s32 3, %v147
  %v149 = vrot.slane %v132, %v148
  %v155 = vsel %vm41, %v115, 0
  %157 = vmatprep.subr.mxu0 %v117
  %158 = vmatpush1.msra.mxu0 %v116
  %159 = vmatprep.subr.mxu0 %v121
  %160 = vmatpush1.msra.mxu0 %v120
  %161 = vmatprep.subr.mxu0 %v125
  %162 = vmatpush1.msra.mxu0 %v124
  %163 = vmatprep.subr.mxu0 %v129
  %164 = vmatpush1.msra.mxu0 %v128
  %165 = vmatprep.subr.mxu0 0.0
  %166 = vmatpush1.msra.mxu0 0.0
  %167 = vmatprep.subr.mxu0 0.0
  %168 = vmatpush1.msra.mxu0 0.0
  %169 = vmatprep.subr.mxu0 0.0
  %170 = vmatpush1.msra.mxu0 0.0
  %171 = vmatprep.subr.mxu0 0.0
  %172 = vmatpush1.msra.mxu0 0.0
  %173 = vmatprep.subr.mxu0 0.0
  %174 = vmatpush1.msra.mxu0 0.0
  %175 = vmatprep.subr.mxu0 0.0
  %176 = vmatpush1.msra.mxu0 0.0
  %177 = vmatprep.subr.mxu0 0.0
  %178 = vmatpush1.msra.mxu0 0.0
  %179 = vmatprep.subr.mxu0 0.0
  %180 = vmatpush1.msra.mxu0 0.0
  %181 = vmatprep.subr.mxu0 0.0
  %182 = vmatpush1.msra.mxu0 0.0
  %183 = vmatprep.subr.mxu0 0.0
  %184 = vmatpush1.msra.mxu0 0.0
  %185 = vmatprep.subr.mxu0 0.0
  %186 = vmatpush1.msra.mxu0 0.0
  %187 = vmatprep.subr.mxu0 0.0
  %188 = vmatpush1.msra.mxu0 0.0
  %189 = vmatprep.subr.mxu0 0.0
  %190 = vmatpush1.msra.mxu0 0.0
  %191 = vmatprep.subr.mxu0 0.0
  %192 = vmatpush1.msra.mxu0 0.0
  %193 = vmatprep.subr.mxu0 0.0
  %194 = vmatpush1.msra.mxu0 0.0
  %195 = vmatprep.subr.mxu0 0.0
  %196 = vmatpush1.msra.mxu0 0.0
  %197 = vmatprep.subr.mxu0 0.0
  %198 = vmatpush1.msra.mxu0 0.0
  %199 = vmatprep.subr.mxu0 0.0
  %200 = vmatpush1.msra.mxu0 0.0
  %201 = vmatprep.subr.mxu0 0.0
  %202 = vmatpush1.msra.mxu0 0.0
  %203 = vmatprep.subr.mxu0 0.0
  %204 = vmatpush1.msra.mxu0 0.0
  %205 = vmatprep.subr.mxu0 0.0
  %206 = vmatpush1.msra.mxu0 0.0
  %207 = vmatprep.subr.mxu0 0.0
  %208 = vmatpush1.msra.mxu0 0.0
  %209 = vmatprep.subr.mxu0 0.0
  %210 = vmatpush1.msra.mxu0 0.0
  %211 = vmatprep.subr.mxu0 0.0
  %212 = vmatpush1.msra.mxu0 0.0
  %213 = vmatprep.subr.mxu0 0.0
  %214 = vmatpush1.msra.mxu0 0.0
  %215 = vmatprep.subr.mxu0 0.0
  %216 = vmatpush1.msra.mxu0 0.0
  %217 = vmatprep.subr.mxu0 0.0
  %218 = vmatpush1.msra.mxu0 0.0
  %219 = vmatprep.subr.mxu0 0.0
  %220 = vmatpush1.msra.mxu0 0.0
  %221 = vmatprep.mubr.f32.mxu0 0.0
  %222 = vmatmul.mubr.f32.gmra.mrb[0].mxu0 %v155
  %v223 = vpop.f32.mrb[0].mxu0
  %v224 = vadd.f32 %v137, %v223
  %v225 = vpop.f32.mrb[0].mxu0
  %v226 = vadd.f32 %v141, %v225
  %227 = vdwg.mxu0
  %228 = vmatprep.subr.mxu0 %v119
  %229 = vmatpush1.msra.mxu0 %v118
  %230 = vmatprep.subr.mxu0 %v123
  %231 = vmatpush1.msra.mxu0 %v122
  %232 = vmatprep.subr.mxu0 %v127
  %233 = vmatpush1.msra.mxu0 %v126
  %234 = vmatprep.subr.mxu0 %v131
  %235 = vmatpush1.msra.mxu0 %v130
  %236 = vmatprep.subr.mxu0 0.0
  %237 = vmatpush1.msra.mxu0 0.0
  %238 = vmatprep.subr.mxu0 0.0
  %239 = vmatpush1.msra.mxu0 0.0
  %240 = vmatprep.subr.mxu0 0.0
  %241 = vmatpush1.msra.mxu0 0.0
  %242 = vmatprep.subr.mxu0 0.0
  %243 = vmatpush1.msra.mxu0 0.0
  %244 = vmatprep.subr.mxu0 0.0
  %245 = vmatpush1.msra.mxu0 0.0
  %246 = vmatprep.subr.mxu0 0.0
  %247 = vmatpush1.msra.mxu0 0.0
  %248 = vmatprep.subr.mxu0 0.0
  %249 = vmatpush1.msra.mxu0 0.0
  %250 = vmatprep.subr.mxu0 0.0
  %251 = vmatpush1.msra.mxu0 0.0
  %252 = vmatprep.subr.mxu0 0.0
  %253 = vmatpush1.msra.mxu0 0.0
  %254 = vmatprep.subr.mxu0 0.0
  %255 = vmatpush1.msra.mxu0 0.0
  %256 = vmatprep.subr.mxu0 0.0
  %257 = vmatpush1.msra.mxu0 0.0
  %258 = vmatprep.subr.mxu0 0.0
  %259 = vmatpush1.msra.mxu0 0.0
  %260 = vmatprep.subr.mxu0 0.0
  %261 = vmatpush1.msra.mxu0 0.0
  %262 = vmatprep.subr.mxu0 0.0
  %263 = vmatpush1.msra.mxu0 0.0
  %264 = vmatprep.subr.mxu0 0.0
  %265 = vmatpush1.msra.mxu0 0.0
  %266 = vmatprep.subr.mxu0 0.0
  %267 = vmatpush1.msra.mxu0 0.0
  %268 = vmatprep.subr.mxu0 0.0
  %269 = vmatpush1.msra.mxu0 0.0
  %270 = vmatprep.subr.mxu0 0.0
  %271 = vmatpush1.msra.mxu0 0.0
  %272 = vmatprep.subr.mxu0 0.0
  %273 = vmatpush1.msra.mxu0 0.0
  %274 = vmatprep.subr.mxu0 0.0
  %275 = vmatpush1.msra.mxu0 0.0
  %276 = vmatprep.subr.mxu0 0.0
  %277 = vmatpush1.msra.mxu0 0.0
  %278 = vmatprep.subr.mxu0 0.0
  %279 = vmatpush1.msra.mxu0 0.0
  %280 = vmatprep.subr.mxu0 0.0
  %281 = vmatpush1.msra.mxu0 0.0
  %282 = vmatprep.subr.mxu0 0.0
  %283 = vmatpush1.msra.mxu0 0.0
  %284 = vmatprep.subr.mxu0 0.0
  %285 = vmatpush1.msra.mxu0 0.0
  %286 = vmatprep.subr.mxu0 0.0
  %287 = vmatpush1.msra.mxu0 0.0
  %288 = vmatprep.subr.mxu0 0.0
  %289 = vmatpush1.msra.mxu0 0.0
  %290 = vmatprep.subr.mxu0 0.0
  %291 = vmatpush1.msra.mxu0 0.0
  %292 = vmatprep.mubr.f32.mxu0 0.0
  %293 = vmatmul.mubr.f32.gmra.mrb[0].mxu0 %v155
  %v294 = vpop.f32.mrb[0].mxu0
  %v295 = vadd.f32 %v145, %v294
  %v296 = vpop.f32.mrb[0].mxu0
  %v297 = vadd.f32 %v149, %v296
  %298 = vdwg.mxu0
  %v299 = vld [vmem:[%s4] sm:$0xff]
  %v300 = vld [vmem:[%s4 + $0x8] sm:$0xff]
  %v301 = vld [vmem:[%s4 + $0x10] sm:$0xff]
  %v302 = vld [vmem:[%s4 + $0x18] sm:$0xff]
  %v303 = vld [vmem:[%s4 + $0x20] sm:$0xff]
  %v304 = vld [vmem:[%s4 + $0x28] sm:$0xff]
  %v305 = vld [vmem:[%s4 + $0x30] sm:$0xff]
  %v306 = vld [vmem:[%s4 + $0x38] sm:$0xff]
  %v307 = vld [vmem:[%s4 + $0x40] sm:$0xff]
  %v308 = vld [vmem:[%s4 + $0x48] sm:$0xff]
  %v309 = vld [vmem:[%s4 + $0x50] sm:$0xff]
  %v310 = vld [vmem:[%s4 + $0x58] sm:$0xff]
  %v311 = vld [vmem:[%s4 + $0x60] sm:$0xff]
  %v312 = vld [vmem:[%s4 + $0x68] sm:$0xff]
  %v313 = vld [vmem:[%s4 + $0x70] sm:$0xff]
  %v314 = vld [vmem:[%s4 + $0x78] sm:$0xff]
  %v316 = vsel %vm41, 0.0, 0
  %318 = vmatprep.subr.mxu0 %v300
  %319 = vmatpush1.msra.mxu0 %v299
  %320 = vmatprep.subr.mxu0 %v304
  %321 = vmatpush1.msra.mxu0 %v303
  %322 = vmatprep.subr.mxu0 %v308
  %323 = vmatpush1.msra.mxu0 %v307
  %324 = vmatprep.subr.mxu0 %v312
  %325 = vmatpush1.msra.mxu0 %v311
  %326 = vmatprep.subr.mxu0 0.0
  %327 = vmatpush1.msra.mxu0 0.0
  %328 = vmatprep.subr.mxu0 0.0
  %329 = vmatpush1.msra.mxu0 0.0
  %330 = vmatprep.subr.mxu0 0.0
  %331 = vmatpush1.msra.mxu0 0.0
  %332 = vmatprep.subr.mxu0 0.0
  %333 = vmatpush1.msra.mxu0 0.0
  %334 = vmatprep.subr.mxu0 0.0
  %335 = vmatpush1.msra.mxu0 0.0
  %336 = vmatprep.subr.mxu0 0.0
  %337 = vmatpush1.msra.mxu0 0.0
  %338 = vmatprep.subr.mxu0 0.0
  %339 = vmatpush1.msra.mxu0 0.0
  %340 = vmatprep.subr.mxu0 0.0
  %341 = vmatpush1.msra.mxu0 0.0
  %342 = vmatprep.subr.mxu0 0.0
  %343 = vmatpush1.msra.mxu0 0.0
  %344 = vmatprep.subr.mxu0 0.0
  %345 = vmatpush1.msra.mxu0 0.0
  %346 = vmatprep.subr.mxu0 0.0
  %347 = vmatpush1.msra.mxu0 0.0
  %348 = vmatprep.subr.mxu0 0.0
  %349 = vmatpush1.msra.mxu0 0.0
  %350 = vmatprep.subr.mxu0 0.0
  %351 = vmatpush1.msra.mxu0 0.0
  %352 = vmatprep.subr.mxu0 0.0
  %353 = vmatpush1.msra.mxu0 0.0
  %354 = vmatprep.subr.mxu0 0.0
  %355 = vmatpush1.msra.mxu0 0.0
  %356 = vmatprep.subr.mxu0 0.0
  %357 = vmatpush1.msra.mxu0 0.0
  %358 = vmatprep.subr.mxu0 0.0
  %359 = vmatpush1.msra.mxu0 0.0
  %360 = vmatprep.subr.mxu0 0.0
  %361 = vmatpush1.msra.mxu0 0.0
  %362 = vmatprep.subr.mxu0 0.0
  %363 = vmatpush1.msra.mxu0 0.0
  %364 = vmatprep.subr.mxu0 0.0
  %365 = vmatpush1.msra.mxu0 0.0
  %366 = vmatprep.subr.mxu0 0.0
  %367 = vmatpush1.msra.mxu0 0.0
  %368 = vmatprep.subr.mxu0 0.0
  %369 = vmatpush1.msra.mxu0 0.0
  %370 = vmatprep.subr.mxu0 0.0
  %371 = vmatpush1.msra.mxu0 0.0
  %372 = vmatprep.subr.mxu0 0.0
  %373 = vmatpush1.msra.mxu0 0.0
  %374 = vmatprep.subr.mxu0 0.0
  %375 = vmatpush1.msra.mxu0 0.0
  %376 = vmatprep.subr.mxu0 0.0
  %377 = vmatpush1.msra.mxu0 0.0
  %378 = vmatprep.subr.mxu0 0.0
  %379 = vmatpush1.msra.mxu0 0.0
  %380 = vmatprep.subr.mxu0 0.0
  %381 = vmatpush1.msra.mxu0 0.0
  %382 = vmatprep.mubr.f32.mxu0 0.0
  %383 = vmatmul.mubr.f32.gmra.mrb[0].mxu0 %v316
  %v384 = vpop.f32.mrb[0].mxu0
  %v385 = vadd.f32 0.0, %v384
  %v386 = vpop.f32.mrb[0].mxu0
  %v387 = vadd.f32 0.0, %v386
  %388 = vdwg.mxu0
  %389 = vmatprep.subr.mxu0 %v302
  %390 = vmatpush1.msra.mxu0 %v301
  %391 = vmatprep.subr.mxu0 %v306
  %392 = vmatpush1.msra.mxu0 %v305
  %393 = vmatprep.subr.mxu0 %v310
  %394 = vmatpush1.msra.mxu0 %v309
  %395 = vmatprep.subr.mxu0 %v314
  %396 = vmatpush1.msra.mxu0 %v313
  %397 = vmatprep.subr.mxu0 0.0
  %398 = vmatpush1.msra.mxu0 0.0
  %399 = vmatprep.subr.mxu0 0.0
  %400 = vmatpush1.msra.mxu0 0.0
  %401 = vmatprep.subr.mxu0 0.0
  %402 = vmatpush1.msra.mxu0 0.0
  %403 = vmatprep.subr.mxu0 0.0
  %404 = vmatpush1.msra.mxu0 0.0
  %405 = vmatprep.subr.mxu0 0.0
  %406 = vmatpush1.msra.mxu0 0.0
  %407 = vmatprep.subr.mxu0 0.0
  %408 = vmatpush1.msra.mxu0 0.0
  %409 = vmatprep.subr.mxu0 0.0
  %410 = vmatpush1.msra.mxu0 0.0
  %411 = vmatprep.subr.mxu0 0.0
  %412 = vmatpush1.msra.mxu0 0.0
  %413 = vmatprep.subr.mxu0 0.0
  %414 = vmatpush1.msra.mxu0 0.0
  %415 = vmatprep.subr.mxu0 0.0
  %416 = vmatpush1.msra.mxu0 0.0
  %417 = vmatprep.subr.mxu0 0.0
  %418 = vmatpush1.msra.mxu0 0.0
  %419 = vmatprep.subr.mxu0 0.0
  %420 = vmatpush1.msra.mxu0 0.0
  %421 = vmatprep.subr.mxu0 0.0
  %422 = vmatpush1.msra.mxu0 0.0
  %423 = vmatprep.subr.mxu0 0.0
  %424 = vmatpush1.msra.mxu0 0.0
  %425 = vmatprep.subr.mxu0 0.0
  %426 = vmatpush1.msra.mxu0 0.0
  %427 = vmatprep.subr.mxu0 0.0
  %428 = vmatpush1.msra.mxu0 0.0
  %429 = vmatprep.subr.mxu0 0.0
  %430 = vmatpush1.msra.mxu0 0.0
  %431 = vmatprep.subr.mxu0 0.0
  %432 = vmatpush1.msra.mxu0 0.0
  %433 = vmatprep.subr.mxu0 0.0
  %434 = vmatpush1.msra.mxu0 0.0
  %435 = vmatprep.subr.mxu0 0.0
  %436 = vmatpush1.msra.mxu0 0.0
  %437 = vmatprep.subr.mxu0 0.0
  %438 = vmatpush1.msra.mxu0 0.0
  %439 = vmatprep.subr.mxu0 0.0
  %440 = vmatpush1.msra.mxu0 0.0
  %441 = vmatprep.subr.mxu0 0.0
  %442 = vmatpush1.msra.mxu0 0.0
  %443 = vmatprep.subr.mxu0 0.0
  %444 = vmatpush1.msra.mxu0 0.0
  %445 = vmatprep.subr.mxu0 0.0
  %446 = vmatpush1.msra.mxu0 0.0
  %447 = vmatprep.subr.mxu0 0.0
  %448 = vmatpush1.msra.mxu0 0.0
  %449 = vmatprep.subr.mxu0 0.0
  %450 = vmatpush1.msra.mxu0 0.0
  %451 = vmatprep.subr.mxu0 0.0
  %452 = vmatpush1.msra.mxu0 0.0
  %453 = vmatprep.mubr.f32.mxu0 0.0
  %454 = vmatmul.mubr.f32.gmra.mrb[0].mxu0 %v316
  %v455 = vpop.f32.mrb[0].mxu0
  %v456 = vadd.f32 0.0, %v455
  %v457 = vpop.f32.mrb[0].mxu0
  %v458 = vadd.f32 0.0, %v457
  %459 = vdwg.mxu0
  %v460 = vadd.f32 %v224, %v385
  %v461 = vadd.f32 %v226, %v387
  %v462 = vadd.f32 %v295, %v456
  %v463 = vadd.f32 %v297, %v458
  %v464 = vxor.u32 %v460, 2147483648
  %v465 = vmul.f32 %v464, 1.442695
  %v466 = vpow.pop %v465
  %v467 = vadd.f32 %v466, 1.0
  %v468 = vrcp.pop %v467
  %v469 = vmul.f32 1.0, %v468
  %v470 = vxor.u32 %v461, 2147483648
  %v471 = vmul.f32 %v470, 1.442695
  %v472 = vpow.pop %v471
  %v473 = vadd.f32 %v472, 1.0
  %v474 = vrcp.pop %v473
  %v475 = vmul.f32 1.0, %v474
  %v476 = vtanh.pop %v462
  %v477 = vxor.u32 %v463, 2147483648
  %v478 = vmul.f32 %v477, 1.442695
  %v479 = vpow.pop %v478
  %v480 = vadd.f32 %v479, 1.0
  %v481 = vrcp.pop %v480
  %v482 = vmul.f32 1.0, %v481
  %v483 = vmul.f32 %v475, 0.0
  %v484 = vmul.f32 %v469, %v476
  %v485 = vadd.f32 %v483, %v484
  %v486 = vtanh.pop %v485
  %v487 = vmul.f32 %v482, %v486
  %v488 = vmax.f32 %v487, 0.0
  %v490 = vsel %vm41, %v487, 0
  %492 = vmatprep.subr.mxu0 %v300
  %493 = vmatpush1.msra.mxu0 %v299
  %494 = vmatprep.subr.mxu0 %v304
  %495 = vmatpush1.msra.mxu0 %v303
  %496 = vmatprep.subr.mxu0 %v308
  %497 = vmatpush1.msra.mxu0 %v307
  %498 = vmatprep.subr.mxu0 %v312
  %499 = vmatpush1.msra.mxu0 %v311
  %500 = vmatprep.subr.mxu0 0.0
  %501 = vmatpush1.msra.mxu0 0.0
  %502 = vmatprep.subr.mxu0 0.0
  %503 = vmatpush1.msra.mxu0 0.0
  %504 = vmatprep.subr.mxu0 0.0
  %505 = vmatpush1.msra.mxu0 0.0
  %506 = vmatprep.subr.mxu0 0.0
  %507 = vmatpush1.msra.mxu0 0.0
  %508 = vmatprep.subr.mxu0 0.0
  %509 = vmatpush1.msra.mxu0 0.0
  %510 = vmatprep.subr.mxu0 0.0
  %511 = vmatpush1.msra.mxu0 0.0
  %512 = vmatprep.subr.mxu0 0.0
  %513 = vmatpush1.msra.mxu0 0.0
  %514 = vmatprep.subr.mxu0 0.0
  %515 = vmatpush1.msra.mxu0 0.0
  %516 = vmatprep.subr.mxu0 0.0
  %517 = vmatpush1.msra.mxu0 0.0
  %518 = vmatprep.subr.mxu0 0.0
  %519 = vmatpush1.msra.mxu0 0.0
  %520 = vmatprep.subr.mxu0 0.0
  %521 = vmatpush1.msra.mxu0 0.0
  %522 = vmatprep.subr.mxu0 0.0
  %523 = vmatpush1.msra.mxu0 0.0
  %524 = vmatprep.subr.mxu0 0.0
  %525 = vmatpush1.msra.mxu0 0.0
  %526 = vmatprep.subr.mxu0 0.0
  %527 = vmatpush1.msra.mxu0 0.0
  %528 = vmatprep.subr.mxu0 0.0
  %529 = vmatpush1.msra.mxu0 0.0
  %530 = vmatprep.subr.mxu0 0.0
  %531 = vmatpush1.msra.mxu0 0.0
  %532 = vmatprep.subr.mxu0 0.0
  %533 = vmatpush1.msra.mxu0 0.0
  %534 = vmatprep.subr.mxu0 0.0
  %535 = vmatpush1.msra.mxu0 0.0
  %536 = vmatprep.subr.mxu0 0.0
  %537 = vmatpush1.msra.mxu0 0.0
  %538 = vmatprep.subr.mxu0 0.0
  %539 = vmatpush1.msra.mxu0 0.0
  %540 = vmatprep.subr.mxu0 0.0
  %541 = vmatpush1.msra.mxu0 0.0
  %542 = vmatprep.subr.mxu0 0.0
  %543 = vmatpush1.msra.mxu0 0.0
  %544 = vmatprep.subr.mxu0 0.0
  %545 = vmatpush1.msra.mxu0 0.0
  %546 = vmatprep.subr.mxu0 0.0
  %547 = vmatpush1.msra.mxu0 0.0
  %548 = vmatprep.subr.mxu0 0.0
  %549 = vmatpush1.msra.mxu0 0.0
  %550 = vmatprep.subr.mxu0 0.0
  %551 = vmatpush1.msra.mxu0 0.0
  %552 = vmatprep.subr.mxu0 0.0
  %553 = vmatpush1.msra.mxu0 0.0
  %554 = vmatprep.subr.mxu0 0.0
  %555 = vmatpush1.msra.mxu0 0.0
  %556 = vmatprep.mubr.f32.mxu0 0.0
  %557 = vmatmul.mubr.f32.gmra.mrb[0].mxu0 %v490
  %v558 = vpop.f32.mrb[0].mxu0
  %v559 = vadd.f32 0.0, %v558
  %v560 = vpop.f32.mrb[0].mxu0
  %v561 = vadd.f32 0.0, %v560
  %562 = vdwg.mxu0
  %563 = vmatprep.subr.mxu0 %v302
  %564 = vmatpush1.msra.mxu0 %v301
  %565 = vmatprep.subr.mxu0 %v306
  %566 = vmatpush1.msra.mxu0 %v305
  %567 = vmatprep.subr.mxu0 %v310
  %568 = vmatpush1.msra.mxu0 %v309
  %569 = vmatprep.subr.mxu0 %v314
  %570 = vmatpush1.msra.mxu0 %v313
  %571 = vmatprep.subr.mxu0 0.0
  %572 = vmatpush1.msra.mxu0 0.0
  %573 = vmatprep.subr.mxu0 0.0
  %574 = vmatpush1.msra.mxu0 0.0
  %575 = vmatprep.subr.mxu0 0.0
  %576 = vmatpush1.msra.mxu0 0.0
  %577 = vmatprep.subr.mxu0 0.0
  %578 = vmatpush1.msra.mxu0 0.0
  %579 = vmatprep.subr.mxu0 0.0
  %580 = vmatpush1.msra.mxu0 0.0
  %581 = vmatprep.subr.mxu0 0.0
  %582 = vmatpush1.msra.mxu0 0.0
  %583 = vmatprep.subr.mxu0 0.0
  %584 = vmatpush1.msra.mxu0 0.0
  %585 = vmatprep.subr.mxu0 0.0
  %586 = vmatpush1.msra.mxu0 0.0
  %587 = vmatprep.subr.mxu0 0.0
  %588 = vmatpush1.msra.mxu0 0.0
  %589 = vmatprep.subr.mxu0 0.0
  %590 = vmatpush1.msra.mxu0 0.0
  %591 = vmatprep.subr.mxu0 0.0
  %592 = vmatpush1.msra.mxu0 0.0
  %593 = vmatprep.subr.mxu0 0.0
  %594 = vmatpush1.msra.mxu0 0.0
  %595 = vmatprep.subr.mxu0 0.0
  %596 = vmatpush1.msra.mxu0 0.0
  %597 = vmatprep.subr.mxu0 0.0
  %598 = vmatpush1.msra.mxu0 0.0
  %599 = vmatprep.subr.mxu0 0.0
  %600 = vmatpush1.msra.mxu0 0.0
  %601 = vmatprep.subr.mxu0 0.0
  %602 = vmatpush1.msra.mxu0 0.0
  %603 = vmatprep.subr.mxu0 0.0
  %604 = vmatpush1.msra.mxu0 0.0
  %605 = vmatprep.subr.mxu0 0.0
  %606 = vmatpush1.msra.mxu0 0.0
  %607 = vmatprep.subr.mxu0 0.0
  %608 = vmatpush1.msra.mxu0 0.0
  %609 = vmatprep.subr.mxu0 0.0
  %610 = vmatpush1.msra.mxu0 0.0
  %611 = vmatprep.subr.mxu0 0.0
  %612 = vmatpush1.msra.mxu0 0.0
  %613 = vmatprep.subr.mxu0 0.0
  %614 = vmatpush1.msra.mxu0 0.0
  %615 = vmatprep.subr.mxu0 0.0
  %616 = vmatpush1.msra.mxu0 0.0
  %617 = vmatprep.subr.mxu0 0.0
  %618 = vmatpush1.msra.mxu0 0.0
  %619 = vmatprep.subr.mxu0 0.0
  %620 = vmatpush1.msra.mxu0 0.0
  %621 = vmatprep.subr.mxu0 0.0
  %622 = vmatpush1.msra.mxu0 0.0
  %623 = vmatprep.subr.mxu0 0.0
  %624 = vmatpush1.msra.mxu0 0.0
  %625 = vmatprep.subr.mxu0 0.0
  %626 = vmatpush1.msra.mxu0 0.0
  %627 = vmatprep.mubr.f32.mxu0 0.0
  %628 = vmatmul.mubr.f32.gmra.mrb[0].mxu0 %v490
  %v629 = vpop.f32.mrb[0].mxu0
  %v630 = vadd.f32 0.0, %v629
  %v631 = vpop.f32.mrb[0].mxu0
  %v632 = vadd.f32 0.0, %v631
  %633 = vdwg.mxu0
  %v634 = vadd.f32 %v224, %v559
  %v635 = vadd.f32 %v226, %v561
  %v636 = vadd.f32 %v295, %v630
  %v637 = vadd.f32 %v297, %v632
  %v638 = vxor.u32 %v634, 2147483648
  %v639 = vmul.f32 %v638, 1.442695
  %v640 = vpow.pop %v639
  %v641 = vadd.f32 %v640, 1.0
  %v642 = vrcp.pop %v641
  %v643 = vmul.f32 1.0, %v642
  %v644 = vxor.u32 %v635, 2147483648
  %v645 = vmul.f32 %v644, 1.442695
  %v646 = vpow.pop %v645
  %v647 = vadd.f32 %v646, 1.0
  %v648 = vrcp.pop %v647
  %v649 = vmul.f32 1.0, %v648
  %v650 = vtanh.pop %v636
  %v651 = vxor.u32 %v637, 2147483648
  %v652 = vmul.f32 %v651, 1.442695
  %v653 = vpow.pop %v652
  %v654 = vadd.f32 %v653, 1.0
  %v655 = vrcp.pop %v654
  %v656 = vmul.f32 1.0, %v655
  %v657 = vmul.f32 %v649, %v485
  %v658 = vmul.f32 %v643, %v650
  %v659 = vadd.f32 %v657, %v658
  %v660 = vtanh.pop %v659
  %v661 = vmul.f32 %v656, %v660
  %v662 = vmax.f32 %v661, 0.0
  %v664 = vsel %vm41, %v661, 0
  %666 = vmatprep.subr.mxu0 %v300
  %667 = vmatpush1.msra.mxu0 %v299
  %668 = vmatprep.subr.mxu0 %v304
  %669 = vmatpush1.msra.mxu0 %v303
  %670 = vmatprep.subr.mxu0 %v308
  %671 = vmatpush1.msra.mxu0 %v307
  %672 = vmatprep.subr.mxu0 %v312
  %673 = vmatpush1.msra.mxu0 %v311
  %674 = vmatprep.subr.mxu0 0.0
  %675 = vmatpush1.msra.mxu0 0.0
  %676 = vmatprep.subr.mxu0 0.0
  %677 = vmatpush1.msra.mxu0 0.0
  %678 = vmatprep.subr.mxu0 0.0
  %679 = vmatpush1.msra.mxu0 0.0
  %680 = vmatprep.subr.mxu0 0.0
  %681 = vmatpush1.msra.mxu0 0.0
  %682 = vmatprep.subr.mxu0 0.0
  %683 = vmatpush1.msra.mxu0 0.0
  %684 = vmatprep.subr.mxu0 0.0
  %685 = vmatpush1.msra.mxu0 0.0
  %686 = vmatprep.subr.mxu0 0.0
  %687 = vmatpush1.msra.mxu0 0.0
  %688 = vmatprep.subr.mxu0 0.0
  %689 = vmatpush1.msra.mxu0 0.0
  %690 = vmatprep.subr.mxu0 0.0
  %691 = vmatpush1.msra.mxu0 0.0
  %692 = vmatprep.subr.mxu0 0.0
  %693 = vmatpush1.msra.mxu0 0.0
  %694 = vmatprep.subr.mxu0 0.0
  %695 = vmatpush1.msra.mxu0 0.0
  %696 = vmatprep.subr.mxu0 0.0
  %697 = vmatpush1.msra.mxu0 0.0
  %698 = vmatprep.subr.mxu0 0.0
  %699 = vmatpush1.msra.mxu0 0.0
  %700 = vmatprep.subr.mxu0 0.0
  %701 = vmatpush1.msra.mxu0 0.0
  %702 = vmatprep.subr.mxu0 0.0
  %703 = vmatpush1.msra.mxu0 0.0
  %704 = vmatprep.subr.mxu0 0.0
  %705 = vmatpush1.msra.mxu0 0.0
  %706 = vmatprep.subr.mxu0 0.0
  %707 = vmatpush1.msra.mxu0 0.0
  %708 = vmatprep.subr.mxu0 0.0
  %709 = vmatpush1.msra.mxu0 0.0
  %710 = vmatprep.subr.mxu0 0.0
  %711 = vmatpush1.msra.mxu0 0.0
  %712 = vmatprep.subr.mxu0 0.0
  %713 = vmatpush1.msra.mxu0 0.0
  %714 = vmatprep.subr.mxu0 0.0
  %715 = vmatpush1.msra.mxu0 0.0
  %716 = vmatprep.subr.mxu0 0.0
  %717 = vmatpush1.msra.mxu0 0.0
  %718 = vmatprep.subr.mxu0 0.0
  %719 = vmatpush1.msra.mxu0 0.0
  %720 = vmatprep.subr.mxu0 0.0
  %721 = vmatpush1.msra.mxu0 0.0
  %722 = vmatprep.subr.mxu0 0.0
  %723 = vmatpush1.msra.mxu0 0.0
  %724 = vmatprep.subr.mxu0 0.0
  %725 = vmatpush1.msra.mxu0 0.0
  %726 = vmatprep.subr.mxu0 0.0
  %727 = vmatpush1.msra.mxu0 0.0
  %728 = vmatprep.subr.mxu0 0.0
  %729 = vmatpush1.msra.mxu0 0.0
  %730 = vmatprep.mubr.f32.mxu0 0.0
  %731 = vmatmul.mubr.f32.gmra.mrb[0].mxu0 %v664
  %v732 = vpop.f32.mrb[0].mxu0
  %v733 = vadd.f32 0.0, %v732
  %v734 = vpop.f32.mrb[0].mxu0
  %v735 = vadd.f32 0.0, %v734
  %736 = vdwg.mxu0
  %737 = vmatprep.subr.mxu0 %v302
  %738 = vmatpush1.msra.mxu0 %v301
  %739 = vmatprep.subr.mxu0 %v306
  %740 = vmatpush1.msra.mxu0 %v305
  %741 = vmatprep.subr.mxu0 %v310
  %742 = vmatpush1.msra.mxu0 %v309
  %743 = vmatprep.subr.mxu0 %v314
  %744 = vmatpush1.msra.mxu0 %v313
  %745 = vmatprep.subr.mxu0 0.0
  %746 = vmatpush1.msra.mxu0 0.0
  %747 = vmatprep.subr.mxu0 0.0
  %748 = vmatpush1.msra.mxu0 0.0
  %749 = vmatprep.subr.mxu0 0.0
  %750 = vmatpush1.msra.mxu0 0.0
  %751 = vmatprep.subr.mxu0 0.0
  %752 = vmatpush1.msra.mxu0 0.0
  %753 = vmatprep.subr.mxu0 0.0
  %754 = vmatpush1.msra.mxu0 0.0
  %755 = vmatprep.subr.mxu0 0.0
  %756 = vmatpush1.msra.mxu0 0.0
  %757 = vmatprep.subr.mxu0 0.0
  %758 = vmatpush1.msra.mxu0 0.0
  %759 = vmatprep.subr.mxu0 0.0
  %760 = vmatpush1.msra.mxu0 0.0
  %761 = vmatprep.subr.mxu0 0.0
  %762 = vmatpush1.msra.mxu0 0.0
  %763 = vmatprep.subr.mxu0 0.0
  %764 = vmatpush1.msra.mxu0 0.0
  %765 = vmatprep.subr.mxu0 0.0
  %766 = vmatpush1.msra.mxu0 0.0
  %767 = vmatprep.subr.mxu0 0.0
  %768 = vmatpush1.msra.mxu0 0.0
  %769 = vmatprep.subr.mxu0 0.0
  %770 = vmatpush1.msra.mxu0 0.0
  %771 = vmatprep.subr.mxu0 0.0
  %772 = vmatpush1.msra.mxu0 0.0
  %773 = vmatprep.subr.mxu0 0.0
  %774 = vmatpush1.msra.mxu0 0.0
  %775 = vmatprep.subr.mxu0 0.0
  %776 = vmatpush1.msra.mxu0 0.0
  %777 = vmatprep.subr.mxu0 0.0
  %778 = vmatpush1.msra.mxu0 0.0
  %779 = vmatprep.subr.mxu0 0.0
  %780 = vmatpush1.msra.mxu0 0.0
  %781 = vmatprep.subr.mxu0 0.0
  %782 = vmatpush1.msra.mxu0 0.0
  %783 = vmatprep.subr.mxu0 0.0
  %784 = vmatpush1.msra.mxu0 0.0
  %785 = vmatprep.subr.mxu0 0.0
  %786 = vmatpush1.msra.mxu0 0.0
  %787 = vmatprep.subr.mxu0 0.0
  %788 = vmatpush1.msra.mxu0 0.0
  %789 = vmatprep.subr.mxu0 0.0
  %790 = vmatpush1.msra.mxu0 0.0
  %791 = vmatprep.subr.mxu0 0.0
  %792 = vmatpush1.msra.mxu0 0.0
  %793 = vmatprep.subr.mxu0 0.0
  %794 = vmatpush1.msra.mxu0 0.0
  %795 = vmatprep.subr.mxu0 0.0
  %796 = vmatpush1.msra.mxu0 0.0
  %797 = vmatprep.subr.mxu0 0.0
  %798 = vmatpush1.msra.mxu0 0.0
  %799 = vmatprep.subr.mxu0 0.0
  %800 = vmatpush1.msra.mxu0 0.0
  %801 = vmatprep.mubr.f32.mxu0 0.0
  %802 = vmatmul.mubr.f32.gmra.mrb[0].mxu0 %v664
  %v803 = vpop.f32.mrb[0].mxu0
  %v804 = vadd.f32 0.0, %v803
  %v805 = vpop.f32.mrb[0].mxu0
  %v806 = vadd.f32 0.0, %v805
  %807 = vdwg.mxu0
  %v808 = vadd.f32 %v224, %v733
  %v809 = vadd.f32 %v226, %v735
  %v810 = vadd.f32 %v295, %v804
  %v811 = vadd.f32 %v297, %v806
  %v812 = vxor.u32 %v808, 2147483648
  %v813 = vmul.f32 %v812, 1.442695
  %v814 = vpow.pop %v813
  %v815 = vadd.f32 %v814, 1.0
  %v816 = vrcp.pop %v815
  %v817 = vmul.f32 1.0, %v816
  %v818 = vxor.u32 %v809, 2147483648
  %v819 = vmul.f32 %v818, 1.442695
  %v820 = vpow.pop %v819
  %v821 = vadd.f32 %v820, 1.0
  %v822 = vrcp.pop %v821
  %v823 = vmul.f32 1.0, %v822
  %v824 = vtanh.pop %v810
  %v825 = vxor.u32 %v811, 2147483648
  %v826 = vmul.f32 %v825, 1.442695
  %v827 = vpow.pop %v826
  %v828 = vadd.f32 %v827, 1.0
  %v829 = vrcp.pop %v828
  %v830 = vmul.f32 1.0, %v829
  %v831 = vmul.f32 %v823, %v659
  %v832 = vmul.f32 %v817, %v824
  %v833 = vadd.f32 %v831, %v832
  %v834 = vtanh.pop %v833
  %v835 = vmul.f32 %v830, %v834
  %v836 = vmax.f32 %v835, 0.0
  %v838 = vsel %vm41, %v835, 0
  %840 = vmatprep.subr.mxu0 %v300
  %841 = vmatpush1.msra.mxu0 %v299
  %842 = vmatprep.subr.mxu0 %v304
  %843 = vmatpush1.msra.mxu0 %v303
  %844 = vmatprep.subr.mxu0 %v308
  %845 = vmatpush1.msra.mxu0 %v307
  %846 = vmatprep.subr.mxu0 %v312
  %847 = vmatpush1.msra.mxu0 %v311
  %848 = vmatprep.subr.mxu0 0.0
  %849 = vmatpush1.msra.mxu0 0.0
  %850 = vmatprep.subr.mxu0 0.0
  %851 = vmatpush1.msra.mxu0 0.0
  %852 = vmatprep.subr.mxu0 0.0
  %853 = vmatpush1.msra.mxu0 0.0
  %854 = vmatprep.subr.mxu0 0.0
  %855 = vmatpush1.msra.mxu0 0.0
  %856 = vmatprep.subr.mxu0 0.0
  %857 = vmatpush1.msra.mxu0 0.0
  %858 = vmatprep.subr.mxu0 0.0
  %859 = vmatpush1.msra.mxu0 0.0
  %860 = vmatprep.subr.mxu0 0.0
  %861 = vmatpush1.msra.mxu0 0.0
  %862 = vmatprep.subr.mxu0 0.0
  %863 = vmatpush1.msra.mxu0 0.0
  %864 = vmatprep.subr.mxu0 0.0
  %865 = vmatpush1.msra.mxu0 0.0
  %866 = vmatprep.subr.mxu0 0.0
  %867 = vmatpush1.msra.mxu0 0.0
  %868 = vmatprep.subr.mxu0 0.0
  %869 = vmatpush1.msra.mxu0 0.0
  %870 = vmatprep.subr.mxu0 0.0
  %871 = vmatpush1.msra.mxu0 0.0
  %872 = vmatprep.subr.mxu0 0.0
  %873 = vmatpush1.msra.mxu0 0.0
  %874 = vmatprep.subr.mxu0 0.0
  %875 = vmatpush1.msra.mxu0 0.0
  %876 = vmatprep.subr.mxu0 0.0
  %877 = vmatpush1.msra.mxu0 0.0
  %878 = vmatprep.subr.mxu0 0.0
  %879 = vmatpush1.msra.mxu0 0.0
  %880 = vmatprep.subr.mxu0 0.0
  %881 = vmatpush1.msra.mxu0 0.0
  %882 = vmatprep.subr.mxu0 0.0
  %883 = vmatpush1.msra.mxu0 0.0
  %884 = vmatprep.subr.mxu0 0.0
  %885 = vmatpush1.msra.mxu0 0.0
  %886 = vmatprep.subr.mxu0 0.0
  %887 = vmatpush1.msra.mxu0 0.0
  %888 = vmatprep.subr.mxu0 0.0
  %889 = vmatpush1.msra.mxu0 0.0
  %890 = vmatprep.subr.mxu0 0.0
  %891 = vmatpush1.msra.mxu0 0.0
  %892 = vmatprep.subr.mxu0 0.0
  %893 = vmatpush1.msra.mxu0 0.0
  %894 = vmatprep.subr.mxu0 0.0
  %895 = vmatpush1.msra.mxu0 0.0
  %896 = vmatprep.subr.mxu0 0.0
  %897 = vmatpush1.msra.mxu0 0.0
  %898 = vmatprep.subr.mxu0 0.0
  %899 = vmatpush1.msra.mxu0 0.0
  %900 = vmatprep.subr.mxu0 0.0
  %901 = vmatpush1.msra.mxu0 0.0
  %902 = vmatprep.subr.mxu0 0.0
  %903 = vmatpush1.msra.mxu0 0.0
  %904 = vmatprep.mubr.f32.mxu0 0.0
  %905 = vmatmul.mubr.f32.gmra.mrb[0].mxu0 %v838
  %v906 = vpop.f32.mrb[0].mxu0
  %v907 = vadd.f32 0.0, %v906
  %v908 = vpop.f32.mrb[0].mxu0
  %v909 = vadd.f32 0.0, %v908
  %910 = vdwg.mxu0
  %911 = vmatprep.subr.mxu0 %v302
  %912 = vmatpush1.msra.mxu0 %v301
  %913 = vmatprep.subr.mxu0 %v306
  %914 = vmatpush1.msra.mxu0 %v305
  %915 = vmatprep.subr.mxu0 %v310
  %916 = vmatpush1.msra.mxu0 %v309
  %917 = vmatprep.subr.mxu0 %v314
  %918 = vmatpush1.msra.mxu0 %v313
  %919 = vmatprep.subr.mxu0 0.0
  %920 = vmatpush1.msra.mxu0 0.0
  %921 = vmatprep.subr.mxu0 0.0
  %922 = vmatpush1.msra.mxu0 0.0
  %923 = vmatprep.subr.mxu0 0.0
  %924 = vmatpush1.msra.mxu0 0.0
  %925 = vmatprep.subr.mxu0 0.0
  %926 = vmatpush1.msra.mxu0 0.0
  %927 = vmatprep.subr.mxu0 0.0
  %928 = vmatpush1.msra.mxu0 0.0
  %929 = vmatprep.subr.mxu0 0.0
  %930 = vmatpush1.msra.mxu0 0.0
  %931 = vmatprep.subr.mxu0 0.0
  %932 = vmatpush1.msra.mxu0 0.0
  %933 = vmatprep.subr.mxu0 0.0
  %934 = vmatpush1.msra.mxu0 0.0
  %935 = vmatprep.subr.mxu0 0.0
  %936 = vmatpush1.msra.mxu0 0.0
  %937 = vmatprep.subr.mxu0 0.0
  %938 = vmatpush1.msra.mxu0 0.0
  %939 = vmatprep.subr.mxu0 0.0
  %940 = vmatpush1.msra.mxu0 0.0
  %941 = vmatprep.subr.mxu0 0.0
  %942 = vmatpush1.msra.mxu0 0.0
  %943 = vmatprep.subr.mxu0 0.0
  %944 = vmatpush1.msra.mxu0 0.0
  %945 = vmatprep.subr.mxu0 0.0
  %946 = vmatpush1.msra.mxu0 0.0
  %947 = vmatprep.subr.mxu0 0.0
  %948 = vmatpush1.msra.mxu0 0.0
  %949 = vmatprep.subr.mxu0 0.0
  %950 = vmatpush1.msra.mxu0 0.0
  %951 = vmatprep.subr.mxu0 0.0
  %952 = vmatpush1.msra.mxu0 0.0
  %953 = vmatprep.subr.mxu0 0.0
  %954 = vmatpush1.msra.mxu0 0.0
  %955 = vmatprep.subr.mxu0 0.0
  %956 = vmatpush1.msra.mxu0 0.0
  %957 = vmatprep.subr.mxu0 0.0
  %958 = vmatpush1.msra.mxu0 0.0
  %959 = vmatprep.subr.mxu0 0.0
  %960 = vmatpush1.msra.mxu0 0.0
  %961 = vmatprep.subr.mxu0 0.0
  %962 = vmatpush1.msra.mxu0 0.0
  %963 = vmatprep.subr.mxu0 0.0
  %964 = vmatpush1.msra.mxu0 0.0
  %965 = vmatprep.subr.mxu0 0.0
  %966 = vmatpush1.msra.mxu0 0.0
  %967 = vmatprep.subr.mxu0 0.0
  %968 = vmatpush1.msra.mxu0 0.0
  %969 = vmatprep.subr.mxu0 0.0
  %970 = vmatpush1.msra.mxu0 0.0
  %971 = vmatprep.subr.mxu0 0.0
  %972 = vmatpush1.msra.mxu0 0.0
  %973 = vmatprep.subr.mxu0 0.0
  %974 = vmatpush1.msra.mxu0 0.0
  %975 = vmatprep.mubr.f32.mxu0 0.0
  %976 = vmatmul.mubr.f32.gmra.mrb[0].mxu0 %v838
  %v977 = vpop.f32.mrb[0].mxu0
  %v978 = vadd.f32 0.0, %v977
  %v979 = vpop.f32.mrb[0].mxu0
  %v980 = vadd.f32 0.0, %v979
  %981 = vdwg.mxu0
  %v982 = vadd.f32 %v224, %v907
  %v983 = vadd.f32 %v226, %v909
  %v984 = vadd.f32 %v295, %v978
  %v985 = vadd.f32 %v297, %v980
  %v986 = vxor.u32 %v982, 2147483648
  %v987 = vmul.f32 %v986, 1.442695
  %v988 = vpow.pop %v987
  %v989 = vadd.f32 %v988, 1.0
  %v990 = vrcp.pop %v989
  %v991 = vmul.f32 1.0, %v990
  %v992 = vxor.u32 %v983, 2147483648
  %v993 = vmul.f32 %v992, 1.442695
  %v994 = vpow.pop %v993
  %v995 = vadd.f32 %v994, 1.0
  %v996 = vrcp.pop %v995
  %v997 = vmul.f32 1.0, %v996
  %v998 = vtanh.pop %v984
  %v999 = vxor.u32 %v985, 2147483648
  %v1000 = vmul.f32 %v999, 1.442695
  %v1001 = vpow.pop %v1000
  %v1002 = vadd.f32 %v1001, 1.0
  %v1003 = vrcp.pop %v1002
  %v1004 = vmul.f32 1.0, %v1003
  %v1005 = vmul.f32 %v997, %v833
  %v1006 = vmul.f32 %v991, %v998
  %v1007 = vadd.f32 %v1005, %v1006
  %v1008 = vtanh.pop %v1007
  %v1009 = vmul.f32 %v1004, %v1008
  %v1010 = vmax.f32 %v1009, 0.0
  %v1012 = vsel %vm41, %v1009, 0
  %1014 = vmatprep.subr.mxu0 %v300
  %1015 = vmatpush1.msra.mxu0 %v299
  %1016 = vmatprep.subr.mxu0 %v304
  %1017 = vmatpush1.msra.mxu0 %v303
  %1018 = vmatprep.subr.mxu0 %v308
  %1019 = vmatpush1.msra.mxu0 %v307
  %1020 = vmatprep.subr.mxu0 %v312
  %1021 = vmatpush1.msra.mxu0 %v311
  %1022 = vmatprep.subr.mxu0 0.0
  %1023 = vmatpush1.msra.mxu0 0.0
  %1024 = vmatprep.subr.mxu0 0.0
  %1025 = vmatpush1.msra.mxu0 0.0
  %1026 = vmatprep.subr.mxu0 0.0
  %1027 = vmatpush1.msra.mxu0 0.0
  %1028 = vmatprep.subr.mxu0 0.0
  %1029 = vmatpush1.msra.mxu0 0.0
  %1030 = vmatprep.subr.mxu0 0.0
  %1031 = vmatpush1.msra.mxu0 0.0
  %1032 = vmatprep.subr.mxu0 0.0
  %1033 = vmatpush1.msra.mxu0 0.0
  %1034 = vmatprep.subr.mxu0 0.0
  %1035 = vmatpush1.msra.mxu0 0.0
  %1036 = vmatprep.subr.mxu0 0.0
  %1037 = vmatpush1.msra.mxu0 0.0
  %1038 = vmatprep.subr.mxu0 0.0
  %1039 = vmatpush1.msra.mxu0 0.0
  %1040 = vmatprep.subr.mxu0 0.0
  %1041 = vmatpush1.msra.mxu0 0.0
  %1042 = vmatprep.subr.mxu0 0.0
  %1043 = vmatpush1.msra.mxu0 0.0
  %1044 = vmatprep.subr.mxu0 0.0
  %1045 = vmatpush1.msra.mxu0 0.0
  %1046 = vmatprep.subr.mxu0 0.0
  %1047 = vmatpush1.msra.mxu0 0.0
  %1048 = vmatprep.subr.mxu0 0.0
  %1049 = vmatpush1.msra.mxu0 0.0
  %1050 = vmatprep.subr.mxu0 0.0
  %1051 = vmatpush1.msra.mxu0 0.0
  %1052 = vmatprep.subr.mxu0 0.0
  %1053 = vmatpush1.msra.mxu0 0.0
  %1054 = vmatprep.subr.mxu0 0.0
  %1055 = vmatpush1.msra.mxu0 0.0
  %1056 = vmatprep.subr.mxu0 0.0
  %1057 = vmatpush1.msra.mxu0 0.0
  %1058 = vmatprep.subr.mxu0 0.0
  %1059 = vmatpush1.msra.mxu0 0.0
  %1060 = vmatprep.subr.mxu0 0.0
  %1061 = vmatpush1.msra.mxu0 0.0
  %1062 = vmatprep.subr.mxu0 0.0
  %1063 = vmatpush1.msra.mxu0 0.0
  %1064 = vmatprep.subr.mxu0 0.0
  %1065 = vmatpush1.msra.mxu0 0.0
  %1066 = vmatprep.subr.mxu0 0.0
  %1067 = vmatpush1.msra.mxu0 0.0
  %1068 = vmatprep.subr.mxu0 0.0
  %1069 = vmatpush1.msra.mxu0 0.0
  %1070 = vmatprep.subr.mxu0 0.0
  %1071 = vmatpush1.msra.mxu0 0.0
  %1072 = vmatprep.subr.mxu0 0.0
  %1073 = vmatpush1.msra.mxu0 0.0
  %1074 = vmatprep.subr.mxu0 0.0
  %1075 = vmatpush1.msra.mxu0 0.0
  %1076 = vmatprep.subr.mxu0 0.0
  %1077 = vmatpush1.msra.mxu0 0.0
  %1078 = vmatprep.mubr.f32.mxu0 0.0
  %1079 = vmatmul.mubr.f32.gmra.mrb[0].mxu0 %v1012
  %v1080 = vpop.f32.mrb[0].mxu0
  %v1081 = vadd.f32 0.0, %v1080
  %v1082 = vpop.f32.mrb[0].mxu0
  %v1083 = vadd.f32 0.0, %v1082
  %1084 = vdwg.mxu0
  %1085 = vmatprep.subr.mxu0 %v302
  %1086 = vmatpush1.msra.mxu0 %v301
  %1087 = vmatprep.subr.mxu0 %v306
  %1088 = vmatpush1.msra.mxu0 %v305
  %1089 = vmatprep.subr.mxu0 %v310
  %1090 = vmatpush1.msra.mxu0 %v309
  %1091 = vmatprep.subr.mxu0 %v314
  %1092 = vmatpush1.msra.mxu0 %v313
  %1093 = vmatprep.subr.mxu0 0.0
  %1094 = vmatpush1.msra.mxu0 0.0
  %1095 = vmatprep.subr.mxu0 0.0
  %1096 = vmatpush1.msra.mxu0 0.0
  %1097 = vmatprep.subr.mxu0 0.0
  %1098 = vmatpush1.msra.mxu0 0.0
  %1099 = vmatprep.subr.mxu0 0.0
  %1100 = vmatpush1.msra.mxu0 0.0
  %1101 = vmatprep.subr.mxu0 0.0
  %1102 = vmatpush1.msra.mxu0 0.0
  %1103 = vmatprep.subr.mxu0 0.0
  %1104 = vmatpush1.msra.mxu0 0.0
  %1105 = vmatprep.subr.mxu0 0.0
  %1106 = vmatpush1.msra.mxu0 0.0
  %1107 = vmatprep.subr.mxu0 0.0
  %1108 = vmatpush1.msra.mxu0 0.0
  %1109 = vmatprep.subr.mxu0 0.0
  %1110 = vmatpush1.msra.mxu0 0.0
  %1111 = vmatprep.subr.mxu0 0.0
  %1112 = vmatpush1.msra.mxu0 0.0
  %1113 = vmatprep.subr.mxu0 0.0
  %1114 = vmatpush1.msra.mxu0 0.0
  %1115 = vmatprep.subr.mxu0 0.0
  %1116 = vmatpush1.msra.mxu0 0.0
  %1117 = vmatprep.subr.mxu0 0.0
  %1118 = vmatpush1.msra.mxu0 0.0
  %1119 = vmatprep.subr.mxu0 0.0
  %1120 = vmatpush1.msra.mxu0 0.0
  %1121 = vmatprep.subr.mxu0 0.0
  %1122 = vmatpush1.msra.mxu0 0.0
  %1123 = vmatprep.subr.mxu0 0.0
  %1124 = vmatpush1.msra.mxu0 0.0
  %1125 = vmatprep.subr.mxu0 0.0
  %1126 = vmatpush1.msra.mxu0 0.0
  %1127 = vmatprep.subr.mxu0 0.0
  %1128 = vmatpush1.msra.mxu0 0.0
  %1129 = vmatprep.subr.mxu0 0.0
  %1130 = vmatpush1.msra.mxu0 0.0
  %1131 = vmatprep.subr.mxu0 0.0
  %1132 = vmatpush1.msra.mxu0 0.0
  %1133 = vmatprep.subr.mxu0 0.0
  %1134 = vmatpush1.msra.mxu0 0.0
  %1135 = vmatprep.subr.mxu0 0.0
  %1136 = vmatpush1.msra.mxu0 0.0
  %1137 = vmatprep.subr.mxu0 0.0
  %1138 = vmatpush1.msra.mxu0 0.0
  %1139 = vmatprep.subr.mxu0 0.0
  %1140 = vmatpush1.msra.mxu0 0.0
  %1141 = vmatprep.subr.mxu0 0.0
  %1142 = vmatpush1.msra.mxu0 0.0
  %1143 = vmatprep.subr.mxu0 0.0
  %1144 = vmatpush1.msra.mxu0 0.0
  %1145 = vmatprep.subr.mxu0 0.0
  %1146 = vmatpush1.msra.mxu0 0.0
  %1147 = vmatprep.subr.mxu0 0.0
  %1148 = vmatpush1.msra.mxu0 0.0
  %1149 = vmatprep.mubr.f32.mxu0 0.0
  %1150 = vmatmul.mubr.f32.gmra.mrb[0].mxu0 %v1012
  %v1151 = vpop.f32.mrb[0].mxu0
  %v1152 = vadd.f32 0.0, %v1151
  %v1153 = vpop.f32.mrb[0].mxu0
  %v1154 = vadd.f32 0.0, %v1153
  %1155 = vdwg.mxu0
  %v1156 = vadd.f32 %v224, %v1081
  %v1157 = vadd.f32 %v226, %v1083
  %v1158 = vadd.f32 %v295, %v1152
  %v1159 = vadd.f32 %v297, %v1154
  %v1160 = vxor.u32 %v1156, 2147483648
  %v1161 = vmul.f32 %v1160, 1.442695
  %v1162 = vpow.pop %v1161
  %v1163 = vadd.f32 %v1162, 1.0
  %v1164 = vrcp.pop %v1163
  %v1165 = vmul.f32 1.0, %v1164
  %v1166 = vxor.u32 %v1157, 2147483648
  %v1167 = vmul.f32 %v1166, 1.442695
  %v1168 = vpow.pop %v1167
  %v1169 = vadd.f32 %v1168, 1.0
  %v1170 = vrcp.pop %v1169
  %v1171 = vmul.f32 1.0, %v1170
  %v1172 = vtanh.pop %v1158
  %v1173 = vxor.u32 %v1159, 2147483648
  %v1174 = vmul.f32 %v1173, 1.442695
  %v1175 = vpow.pop %v1174
  %v1176 = vadd.f32 %v1175, 1.0
  %v1177 = vrcp.pop %v1176
  %v1178 = vmul.f32 1.0, %v1177
  %v1179 = vmul.f32 %v1171, %v1007
  %v1180 = vmul.f32 %v1165, %v1172
  %v1181 = vadd.f32 %v1179, %v1180
  %v1182 = vtanh.pop %v1181
  %v1183 = vmul.f32 %v1178, %v1182
  %v1184 = vmax.f32 %v1183, 0.0
  %v1186 = vsel %vm41, %v1183, 0
  %1188 = vmatprep.subr.mxu0 %v300
  %1189 = vmatpush1.msra.mxu0 %v299
  %1190 = vmatprep.subr.mxu0 %v304
  %1191 = vmatpush1.msra.mxu0 %v303
  %1192 = vmatprep.subr.mxu0 %v308
  %1193 = vmatpush1.msra.mxu0 %v307
  %1194 = vmatprep.subr.mxu0 %v312
  %1195 = vmatpush1.msra.mxu0 %v311
  %1196 = vmatprep.subr.mxu0 0.0
  %1197 = vmatpush1.msra.mxu0 0.0
  %1198 = vmatprep.subr.mxu0 0.0
  %1199 = vmatpush1.msra.mxu0 0.0
  %1200 = vmatprep.subr.mxu0 0.0
  %1201 = vmatpush1.msra.mxu0 0.0
  %1202 = vmatprep.subr.mxu0 0.0
  %1203 = vmatpush1.msra.mxu0 0.0
  %1204 = vmatprep.subr.mxu0 0.0
  %1205 = vmatpush1.msra.mxu0 0.0
  %1206 = vmatprep.subr.mxu0 0.0
  %1207 = vmatpush1.msra.mxu0 0.0
  %1208 = vmatprep.subr.mxu0 0.0
  %1209 = vmatpush1.msra.mxu0 0.0
  %1210 = vmatprep.subr.mxu0 0.0
  %1211 = vmatpush1.msra.mxu0 0.0
  %1212 = vmatprep.subr.mxu0 0.0
  %1213 = vmatpush1.msra.mxu0 0.0
  %1214 = vmatprep.subr.mxu0 0.0
  %1215 = vmatpush1.msra.mxu0 0.0
  %1216 = vmatprep.subr.mxu0 0.0
  %1217 = vmatpush1.msra.mxu0 0.0
  %1218 = vmatprep.subr.mxu0 0.0
  %1219 = vmatpush1.msra.mxu0 0.0
  %1220 = vmatprep.subr.mxu0 0.0
  %1221 = vmatpush1.msra.mxu0 0.0
  %1222 = vmatprep.subr.mxu0 0.0
  %1223 = vmatpush1.msra.mxu0 0.0
  %1224 = vmatprep.subr.mxu0 0.0
  %1225 = vmatpush1.msra.mxu0 0.0
  %1226 = vmatprep.subr.mxu0 0.0
  %1227 = vmatpush1.msra.mxu0 0.0
  %1228 = vmatprep.subr.mxu0 0.0
  %1229 = vmatpush1.msra.mxu0 0.0
  %1230 = vmatprep.subr.mxu0 0.0
  %1231 = vmatpush1.msra.mxu0 0.0
  %1232 = vmatprep.subr.mxu0 0.0
  %1233 = vmatpush1.msra.mxu0 0.0
  %1234 = vmatprep.subr.mxu0 0.0
  %1235 = vmatpush1.msra.mxu0 0.0
  %1236 = vmatprep.subr.mxu0 0.0
  %1237 = vmatpush1.msra.mxu0 0.0
  %1238 = vmatprep.subr.mxu0 0.0
  %1239 = vmatpush1.msra.mxu0 0.0
  %1240 = vmatprep.subr.mxu0 0.0
  %1241 = vmatpush1.msra.mxu0 0.0
  %1242 = vmatprep.subr.mxu0 0.0
  %1243 = vmatpush1.msra.mxu0 0.0
  %1244 = vmatprep.subr.mxu0 0.0
  %1245 = vmatpush1.msra.mxu0 0.0
  %1246 = vmatprep.subr.mxu0 0.0
  %1247 = vmatpush1.msra.mxu0 0.0
  %1248 = vmatprep.subr.mxu0 0.0
  %1249 = vmatpush1.msra.mxu0 0.0
  %1250 = vmatprep.subr.mxu0 0.0
  %1251 = vmatpush1.msra.mxu0 0.0
  %1252 = vmatprep.mubr.f32.mxu0 0.0
  %1253 = vmatmul.mubr.f32.gmra.mrb[0].mxu0 %v1186
  %v1254 = vpop.f32.mrb[0].mxu0
  %v1255 = vadd.f32 0.0, %v1254
  %v1256 = vpop.f32.mrb[0].mxu0
  %v1257 = vadd.f32 0.0, %v1256
  %1258 = vdwg.mxu0
  %1259 = vmatprep.subr.mxu0 %v302
  %1260 = vmatpush1.msra.mxu0 %v301
  %1261 = vmatprep.subr.mxu0 %v306
  %1262 = vmatpush1.msra.mxu0 %v305
  %1263 = vmatprep.subr.mxu0 %v310
  %1264 = vmatpush1.msra.mxu0 %v309
  %1265 = vmatprep.subr.mxu0 %v314
  %1266 = vmatpush1.msra.mxu0 %v313
  %1267 = vmatprep.subr.mxu0 0.0
  %1268 = vmatpush1.msra.mxu0 0.0
  %1269 = vmatprep.subr.mxu0 0.0
  %1270 = vmatpush1.msra.mxu0 0.0
  %1271 = vmatprep.subr.mxu0 0.0
  %1272 = vmatpush1.msra.mxu0 0.0
  %1273 = vmatprep.subr.mxu0 0.0
  %1274 = vmatpush1.msra.mxu0 0.0
  %1275 = vmatprep.subr.mxu0 0.0
  %1276 = vmatpush1.msra.mxu0 0.0
  %1277 = vmatprep.subr.mxu0 0.0
  %1278 = vmatpush1.msra.mxu0 0.0
  %1279 = vmatprep.subr.mxu0 0.0
  %1280 = vmatpush1.msra.mxu0 0.0
  %1281 = vmatprep.subr.mxu0 0.0
  %1282 = vmatpush1.msra.mxu0 0.0
  %1283 = vmatprep.subr.mxu0 0.0
  %1284 = vmatpush1.msra.mxu0 0.0
  %1285 = vmatprep.subr.mxu0 0.0
  %1286 = vmatpush1.msra.mxu0 0.0
  %1287 = vmatprep.subr.mxu0 0.0
  %1288 = vmatpush1.msra.mxu0 0.0
  %1289 = vmatprep.subr.mxu0 0.0
  %1290 = vmatpush1.msra.mxu0 0.0
  %1291 = vmatprep.subr.mxu0 0.0
  %1292 = vmatpush1.msra.mxu0 0.0
  %1293 = vmatprep.subr.mxu0 0.0
  %1294 = vmatpush1.msra.mxu0 0.0
  %1295 = vmatprep.subr.mxu0 0.0
  %1296 = vmatpush1.msra.mxu0 0.0
  %1297 = vmatprep.subr.mxu0 0.0
  %1298 = vmatpush1.msra.mxu0 0.0
  %1299 = vmatprep.subr.mxu0 0.0
  %1300 = vmatpush1.msra.mxu0 0.0
  %1301 = vmatprep.subr.mxu0 0.0
  %1302 = vmatpush1.msra.mxu0 0.0
  %1303 = vmatprep.subr.mxu0 0.0
  %1304 = vmatpush1.msra.mxu0 0.0
  %1305 = vmatprep.subr.mxu0 0.0
  %1306 = vmatpush1.msra.mxu0 0.0
  %1307 = vmatprep.subr.mxu0 0.0
  %1308 = vmatpush1.msra.mxu0 0.0
  %1309 = vmatprep.subr.mxu0 0.0
  %1310 = vmatpush1.msra.mxu0 0.0
  %1311 = vmatprep.subr.mxu0 0.0
  %1312 = vmatpush1.msra.mxu0 0.0
  %1313 = vmatprep.subr.mxu0 0.0
  %1314 = vmatpush1.msra.mxu0 0.0
  %1315 = vmatprep.subr.mxu0 0.0
  %1316 = vmatpush1.msra.mxu0 0.0
  %1317 = vmatprep.subr.mxu0 0.0
  %1318 = vmatpush1.msra.mxu0 0.0
  %1319 = vmatprep.subr.mxu0 0.0
  %1320 = vmatpush1.msra.mxu0 0.0
  %1321 = vmatprep.subr.mxu0 0.0
  %1322 = vmatpush1.msra.mxu0 0.0
  %1323 = vmatprep.mubr.f32.mxu0 0.0
  %1324 = vmatmul.mubr.f32.gmra.mrb[0].mxu0 %v1186
  %v1325 = vpop.f32.mrb[0].mxu0
  %v1326 = vadd.f32 0.0, %v1325
  %v1327 = vpop.f32.mrb[0].mxu0
  %v1328 = vadd.f32 0.0, %v1327
  %1329 = vdwg.mxu0
  %v1330 = vadd.f32 %v224, %v1255
  %v1331 = vadd.f32 %v226, %v1257
  %v1332 = vadd.f32 %v295, %v1326
  %v1333 = vadd.f32 %v297, %v1328
  %v1334 = vxor.u32 %v1330, 2147483648
  %v1335 = vmul.f32 %v1334, 1.442695
  %v1336 = vpow.pop %v1335
  %v1337 = vadd.f32 %v1336, 1.0
  %v1338 = vrcp.pop %v1337
  %v1339 = vmul.f32 1.0, %v1338
  %v1340 = vxor.u32 %v1331, 2147483648
  %v1341 = vmul.f32 %v1340, 1.442695
  %v1342 = vpow.pop %v1341
  %v1343 = vadd.f32 %v1342, 1.0
  %v1344 = vrcp.pop %v1343
  %v1345 = vmul.f32 1.0, %v1344
  %v1346 = vtanh.pop %v1332
  %v1347 = vxor.u32 %v1333, 2147483648
  %v1348 = vmul.f32 %v1347, 1.442695
  %v1349 = vpow.pop %v1348
  %v1350 = vadd.f32 %v1349, 1.0
  %v1351 = vrcp.pop %v1350
  %v1352 = vmul.f32 1.0, %v1351
  %v1353 = vmul.f32 %v1345, %v1181
  %v1354 = vmul.f32 %v1339, %v1346
  %v1355 = vadd.f32 %v1353, %v1354
  %v1356 = vtanh.pop %v1355
  %v1357 = vmul.f32 %v1352, %v1356
  %v1358 = vmax.f32 %v1357, 0.0
  %v1360 = vsel %vm41, %v1357, 0
  %1362 = vmatprep.subr.mxu0 %v300
  %1363 = vmatpush1.msra.mxu0 %v299
  %1364 = vmatprep.subr.mxu0 %v304
  %1365 = vmatpush1.msra.mxu0 %v303
  %1366 = vmatprep.subr.mxu0 %v308
  %1367 = vmatpush1.msra.mxu0 %v307
  %1368 = vmatprep.subr.mxu0 %v312
  %1369 = vmatpush1.msra.mxu0 %v311
  %1370 = vmatprep.subr.mxu0 0.0
  %1371 = vmatpush1.msra.mxu0 0.0
  %1372 = vmatprep.subr.mxu0 0.0
  %1373 = vmatpush1.msra.mxu0 0.0
  %1374 = vmatprep.subr.mxu0 0.0
  %1375 = vmatpush1.msra.mxu0 0.0
  %1376 = vmatprep.subr.mxu0 0.0
  %1377 = vmatpush1.msra.mxu0 0.0
  %1378 = vmatprep.subr.mxu0 0.0
  %1379 = vmatpush1.msra.mxu0 0.0
  %1380 = vmatprep.subr.mxu0 0.0
  %1381 = vmatpush1.msra.mxu0 0.0
  %1382 = vmatprep.subr.mxu0 0.0
  %1383 = vmatpush1.msra.mxu0 0.0
  %1384 = vmatprep.subr.mxu0 0.0
  %1385 = vmatpush1.msra.mxu0 0.0
  %1386 = vmatprep.subr.mxu0 0.0
  %1387 = vmatpush1.msra.mxu0 0.0
  %1388 = vmatprep.subr.mxu0 0.0
  %1389 = vmatpush1.msra.mxu0 0.0
  %1390 = vmatprep.subr.mxu0 0.0
  %1391 = vmatpush1.msra.mxu0 0.0
  %1392 = vmatprep.subr.mxu0 0.0
  %1393 = vmatpush1.msra.mxu0 0.0
  %1394 = vmatprep.subr.mxu0 0.0
  %1395 = vmatpush1.msra.mxu0 0.0
  %1396 = vmatprep.subr.mxu0 0.0
  %1397 = vmatpush1.msra.mxu0 0.0
  %1398 = vmatprep.subr.mxu0 0.0
  %1399 = vmatpush1.msra.mxu0 0.0
  %1400 = vmatprep.subr.mxu0 0.0
  %1401 = vmatpush1.msra.mxu0 0.0
  %1402 = vmatprep.subr.mxu0 0.0
  %1403 = vmatpush1.msra.mxu0 0.0
  %1404 = vmatprep.subr.mxu0 0.0
  %1405 = vmatpush1.msra.mxu0 0.0
  %1406 = vmatprep.subr.mxu0 0.0
  %1407 = vmatpush1.msra.mxu0 0.0
  %1408 = vmatprep.subr.mxu0 0.0
  %1409 = vmatpush1.msra.mxu0 0.0
  %1410 = vmatprep.subr.mxu0 0.0
  %1411 = vmatpush1.msra.mxu0 0.0
  %1412 = vmatprep.subr.mxu0 0.0
  %1413 = vmatpush1.msra.mxu0 0.0
  %1414 = vmatprep.subr.mxu0 0.0
  %1415 = vmatpush1.msra.mxu0 0.0
  %1416 = vmatprep.subr.mxu0 0.0
  %1417 = vmatpush1.msra.mxu0 0.0
  %1418 = vmatprep.subr.mxu0 0.0
  %1419 = vmatpush1.msra.mxu0 0.0
  %1420 = vmatprep.subr.mxu0 0.0
  %1421 = vmatpush1.msra.mxu0 0.0
  %1422 = vmatprep.subr.mxu0 0.0
  %1423 = vmatpush1.msra.mxu0 0.0
  %1424 = vmatprep.subr.mxu0 0.0
  %1425 = vmatpush1.msra.mxu0 0.0
  %1426 = vmatprep.mubr.f32.mxu0 0.0
  %1427 = vmatmul.mubr.f32.gmra.mrb[0].mxu0 %v1360
  %v1428 = vpop.f32.mrb[0].mxu0
  %v1429 = vadd.f32 0.0, %v1428
  %v1430 = vpop.f32.mrb[0].mxu0
  %v1431 = vadd.f32 0.0, %v1430
  %1432 = vdwg.mxu0
  %1433 = vmatprep.subr.mxu0 %v302
  %1434 = vmatpush1.msra.mxu0 %v301
  %1435 = vmatprep.subr.mxu0 %v306
  %1436 = vmatpush1.msra.mxu0 %v305
  %1437 = vmatprep.subr.mxu0 %v310
  %1438 = vmatpush1.msra.mxu0 %v309
  %1439 = vmatprep.subr.mxu0 %v314
  %1440 = vmatpush1.msra.mxu0 %v313
  %1441 = vmatprep.subr.mxu0 0.0
  %1442 = vmatpush1.msra.mxu0 0.0
  %1443 = vmatprep.subr.mxu0 0.0
  %1444 = vmatpush1.msra.mxu0 0.0
  %1445 = vmatprep.subr.mxu0 0.0
  %1446 = vmatpush1.msra.mxu0 0.0
  %1447 = vmatprep.subr.mxu0 0.0
  %1448 = vmatpush1.msra.mxu0 0.0
  %1449 = vmatprep.subr.mxu0 0.0
  %1450 = vmatpush1.msra.mxu0 0.0
  %1451 = vmatprep.subr.mxu0 0.0
  %1452 = vmatpush1.msra.mxu0 0.0
  %1453 = vmatprep.subr.mxu0 0.0
  %1454 = vmatpush1.msra.mxu0 0.0
  %1455 = vmatprep.subr.mxu0 0.0
  %1456 = vmatpush1.msra.mxu0 0.0
  %1457 = vmatprep.subr.mxu0 0.0
  %1458 = vmatpush1.msra.mxu0 0.0
  %1459 = vmatprep.subr.mxu0 0.0
  %1460 = vmatpush1.msra.mxu0 0.0
  %1461 = vmatprep.subr.mxu0 0.0
  %1462 = vmatpush1.msra.mxu0 0.0
  %1463 = vmatprep.subr.mxu0 0.0
  %1464 = vmatpush1.msra.mxu0 0.0
  %1465 = vmatprep.subr.mxu0 0.0
  %1466 = vmatpush1.msra.mxu0 0.0
  %1467 = vmatprep.subr.mxu0 0.0
  %1468 = vmatpush1.msra.mxu0 0.0
  %1469 = vmatprep.subr.mxu0 0.0
  %1470 = vmatpush1.msra.mxu0 0.0
  %1471 = vmatprep.subr.mxu0 0.0
  %1472 = vmatpush1.msra.mxu0 0.0
  %1473 = vmatprep.subr.mxu0 0.0
  %1474 = vmatpush1.msra.mxu0 0.0
  %1475 = vmatprep.subr.mxu0 0.0
  %1476 = vmatpush1.msra.mxu0 0.0
  %1477 = vmatprep.subr.mxu0 0.0
  %1478 = vmatpush1.msra.mxu0 0.0
  %1479 = vmatprep.subr.mxu0 0.0
  %1480 = vmatpush1.msra.mxu0 0.0
  %1481 = vmatprep.subr.mxu0 0.0
  %1482 = vmatpush1.msra.mxu0 0.0
  %1483 = vmatprep.subr.mxu0 0.0
  %1484 = vmatpush1.msra.mxu0 0.0
  %1485 = vmatprep.subr.mxu0 0.0
  %1486 = vmatpush1.msra.mxu0 0.0
  %1487 = vmatprep.subr.mxu0 0.0
  %1488 = vmatpush1.msra.mxu0 0.0
  %1489 = vmatprep.subr.mxu0 0.0
  %1490 = vmatpush1.msra.mxu0 0.0
  %1491 = vmatprep.subr.mxu0 0.0
  %1492 = vmatpush1.msra.mxu0 0.0
  %1493 = vmatprep.subr.mxu0 0.0
  %1494 = vmatpush1.msra.mxu0 0.0
  %1495 = vmatprep.subr.mxu0 0.0
  %1496 = vmatpush1.msra.mxu0 0.0
  %1497 = vmatprep.mubr.f32.mxu0 0.0
  %1498 = vmatmul.mubr.f32.gmra.mrb[0].mxu0 %v1360
  %v1499 = vpop.f32.mrb[0].mxu0
  %v1500 = vadd.f32 0.0, %v1499
  %v1501 = vpop.f32.mrb[0].mxu0
  %v1502 = vadd.f32 0.0, %v1501
  %1503 = vdwg.mxu0
  %v1504 = vadd.f32 %v224, %v1429
  %v1505 = vadd.f32 %v226, %v1431
  %v1506 = vadd.f32 %v295, %v1500
  %v1507 = vadd.f32 %v297, %v1502
  %v1508 = vxor.u32 %v1504, 2147483648
  %v1509 = vmul.f32 %v1508, 1.442695
  %v1510 = vpow.pop %v1509
  %v1511 = vadd.f32 %v1510, 1.0
  %v1512 = vrcp.pop %v1511
  %v1513 = vmul.f32 1.0, %v1512
  %v1514 = vxor.u32 %v1505, 2147483648
  %v1515 = vmul.f32 %v1514, 1.442695
  %v1516 = vpow.pop %v1515
  %v1517 = vadd.f32 %v1516, 1.0
  %v1518 = vrcp.pop %v1517
  %v1519 = vmul.f32 1.0, %v1518
  %v1520 = vtanh.pop %v1506
  %v1521 = vxor.u32 %v1507, 2147483648
  %v1522 = vmul.f32 %v1521, 1.442695
  %v1523 = vpow.pop %v1522
  %v1524 = vadd.f32 %v1523, 1.0
  %v1525 = vrcp.pop %v1524
  %v1526 = vmul.f32 1.0, %v1525
  %v1527 = vmul.f32 %v1519, %v1355
  %v1528 = vmul.f32 %v1513, %v1520
  %v1529 = vadd.f32 %v1527, %v1528
  %v1530 = vtanh.pop %v1529
  %v1531 = vmul.f32 %v1526, %v1530
  %v1532 = vmax.f32 %v1531, 0.0
  %v1534 = vsel %vm41, %v1531, 0
  %1536 = vmatprep.subr.mxu0 %v300
  %1537 = vmatpush1.msra.mxu0 %v299
  %1538 = vmatprep.subr.mxu0 %v304
  %1539 = vmatpush1.msra.mxu0 %v303
  %1540 = vmatprep.subr.mxu0 %v308
  %1541 = vmatpush1.msra.mxu0 %v307
  %1542 = vmatprep.subr.mxu0 %v312
  %1543 = vmatpush1.msra.mxu0 %v311
  %1544 = vmatprep.subr.mxu0 0.0
  %1545 = vmatpush1.msra.mxu0 0.0
  %1546 = vmatprep.subr.mxu0 0.0
  %1547 = vmatpush1.msra.mxu0 0.0
  %1548 = vmatprep.subr.mxu0 0.0
  %1549 = vmatpush1.msra.mxu0 0.0
  %1550 = vmatprep.subr.mxu0 0.0
  %1551 = vmatpush1.msra.mxu0 0.0
  %1552 = vmatprep.subr.mxu0 0.0
  %1553 = vmatpush1.msra.mxu0 0.0
  %1554 = vmatprep.subr.mxu0 0.0
  %1555 = vmatpush1.msra.mxu0 0.0
  %1556 = vmatprep.subr.mxu0 0.0
  %1557 = vmatpush1.msra.mxu0 0.0
  %1558 = vmatprep.subr.mxu0 0.0
  %1559 = vmatpush1.msra.mxu0 0.0
  %1560 = vmatprep.subr.mxu0 0.0
  %1561 = vmatpush1.msra.mxu0 0.0
  %1562 = vmatprep.subr.mxu0 0.0
  %1563 = vmatpush1.msra.mxu0 0.0
  %1564 = vmatprep.subr.mxu0 0.0
  %1565 = vmatpush1.msra.mxu0 0.0
  %1566 = vmatprep.subr.mxu0 0.0
  %1567 = vmatpush1.msra.mxu0 0.0
  %1568 = vmatprep.subr.mxu0 0.0
  %1569 = vmatpush1.msra.mxu0 0.0
  %1570 = vmatprep.subr.mxu0 0.0
  %1571 = vmatpush1.msra.mxu0 0.0
  %1572 = vmatprep.subr.mxu0 0.0
  %1573 = vmatpush1.msra.mxu0 0.0
  %1574 = vmatprep.subr.mxu0 0.0
  %1575 = vmatpush1.msra.mxu0 0.0
  %1576 = vmatprep.subr.mxu0 0.0
  %1577 = vmatpush1.msra.mxu0 0.0
  %1578 = vmatprep.subr.mxu0 0.0
  %1579 = vmatpush1.msra.mxu0 0.0
  %1580 = vmatprep.subr.mxu0 0.0
  %1581 = vmatpush1.msra.mxu0 0.0
  %1582 = vmatprep.subr.mxu0 0.0
  %1583 = vmatpush1.msra.mxu0 0.0
  %1584 = vmatprep.subr.mxu0 0.0
  %1585 = vmatpush1.msra.mxu0 0.0
  %1586 = vmatprep.subr.mxu0 0.0
  %1587 = vmatpush1.msra.mxu0 0.0
  %1588 = vmatprep.subr.mxu0 0.0
  %1589 = vmatpush1.msra.mxu0 0.0
  %1590 = vmatprep.subr.mxu0 0.0
  %1591 = vmatpush1.msra.mxu0 0.0
  %1592 = vmatprep.subr.mxu0 0.0
  %1593 = vmatpush1.msra.mxu0 0.0
  %1594 = vmatprep.subr.mxu0 0.0
  %1595 = vmatpush1.msra.mxu0 0.0
  %1596 = vmatprep.subr.mxu0 0.0
  %1597 = vmatpush1.msra.mxu0 0.0
  %1598 = vmatprep.subr.mxu0 0.0
  %1599 = vmatpush1.msra.mxu0 0.0
  %1600 = vmatprep.mubr.f32.mxu0 0.0
  %1601 = vmatmul.mubr.f32.gmra.mrb[0].mxu0 %v1534
  %v1602 = vpop.f32.mrb[0].mxu0
  %v1603 = vadd.f32 0.0, %v1602
  %v1604 = vpop.f32.mrb[0].mxu0
  %v1605 = vadd.f32 0.0, %v1604
  %1606 = vdwg.mxu0
  %1607 = vmatprep.subr.mxu0 %v302
  %1608 = vmatpush1.msra.mxu0 %v301
  %1609 = vmatprep.subr.mxu0 %v306
  %1610 = vmatpush1.msra.mxu0 %v305
  %1611 = vmatprep.subr.mxu0 %v310
  %1612 = vmatpush1.msra.mxu0 %v309
  %1613 = vmatprep.subr.mxu0 %v314
  %1614 = vmatpush1.msra.mxu0 %v313
  %1615 = vmatprep.subr.mxu0 0.0
  %1616 = vmatpush1.msra.mxu0 0.0
  %1617 = vmatprep.subr.mxu0 0.0
  %1618 = vmatpush1.msra.mxu0 0.0
  %1619 = vmatprep.subr.mxu0 0.0
  %1620 = vmatpush1.msra.mxu0 0.0
  %1621 = vmatprep.subr.mxu0 0.0
  %1622 = vmatpush1.msra.mxu0 0.0
  %1623 = vmatprep.subr.mxu0 0.0
  %1624 = vmatpush1.msra.mxu0 0.0
  %1625 = vmatprep.subr.mxu0 0.0
  %1626 = vmatpush1.msra.mxu0 0.0
  %1627 = vmatprep.subr.mxu0 0.0
  %1628 = vmatpush1.msra.mxu0 0.0
  %1629 = vmatprep.subr.mxu0 0.0
  %1630 = vmatpush1.msra.mxu0 0.0
  %1631 = vmatprep.subr.mxu0 0.0
  %1632 = vmatpush1.msra.mxu0 0.0
  %1633 = vmatprep.subr.mxu0 0.0
  %1634 = vmatpush1.msra.mxu0 0.0
  %1635 = vmatprep.subr.mxu0 0.0
  %1636 = vmatpush1.msra.mxu0 0.0
  %1637 = vmatprep.subr.mxu0 0.0
  %1638 = vmatpush1.msra.mxu0 0.0
  %1639 = vmatprep.subr.mxu0 0.0
  %1640 = vmatpush1.msra.mxu0 0.0
  %1641 = vmatprep.subr.mxu0 0.0
  %1642 = vmatpush1.msra.mxu0 0.0
  %1643 = vmatprep.subr.mxu0 0.0
  %1644 = vmatpush1.msra.mxu0 0.0
  %1645 = vmatprep.subr.mxu0 0.0
  %1646 = vmatpush1.msra.mxu0 0.0
  %1647 = vmatprep.subr.mxu0 0.0
  %1648 = vmatpush1.msra.mxu0 0.0
  %1649 = vmatprep.subr.mxu0 0.0
  %1650 = vmatpush1.msra.mxu0 0.0
  %1651 = vmatprep.subr.mxu0 0.0
  %1652 = vmatpush1.msra.mxu0 0.0
  %1653 = vmatprep.subr.mxu0 0.0
  %1654 = vmatpush1.msra.mxu0 0.0
  %1655 = vmatprep.subr.mxu0 0.0
  %1656 = vmatpush1.msra.mxu0 0.0
  %1657 = vmatprep.subr.mxu0 0.0
  %1658 = vmatpush1.msra.mxu0 0.0
  %1659 = vmatprep.subr.mxu0 0.0
  %1660 = vmatpush1.msra.mxu0 0.0
  %1661 = vmatprep.subr.mxu0 0.0
  %1662 = vmatpush1.msra.mxu0 0.0
  %1663 = vmatprep.subr.mxu0 0.0
  %1664 = vmatpush1.msra.mxu0 0.0
  %1665 = vmatprep.subr.mxu0 0.0
  %1666 = vmatpush1.msra.mxu0 0.0
  %1667 = vmatprep.subr.mxu0 0.0
  %1668 = vmatpush1.msra.mxu0 0.0
  %1669 = vmatprep.subr.mxu0 0.0
  %1670 = vmatpush1.msra.mxu0 0.0
  %1671 = vmatprep.mubr.f32.mxu0 0.0
  %1672 = vmatmul.mubr.f32.gmra.mrb[0].mxu0 %v1534
  %v1673 = vpop.f32.mrb[0].mxu0
  %v1674 = vadd.f32 0.0, %v1673
  %v1675 = vpop.f32.mrb[0].mxu0
  %v1676 = vadd.f32 0.0, %v1675
  %1677 = vdwg.mxu0
  %v1678 = vadd.f32 %v224, %v1603
  %v1679 = vadd.f32 %v226, %v1605
  %v1680 = vadd.f32 %v295, %v1674
  %v1681 = vadd.f32 %v297, %v1676
  %v1682 = vxor.u32 %v1678, 2147483648
  %v1683 = vmul.f32 %v1682, 1.442695
  %v1684 = vpow.pop %v1683
  %v1685 = vadd.f32 %v1684, 1.0
  %v1686 = vrcp.pop %v1685
  %v1687 = vmul.f32 1.0, %v1686
  %v1688 = vxor.u32 %v1679, 2147483648
  %v1689 = vmul.f32 %v1688, 1.442695
  %v1690 = vpow.pop %v1689
  %v1691 = vadd.f32 %v1690, 1.0
  %v1692 = vrcp.pop %v1691
  %v1693 = vmul.f32 1.0, %v1692
  %v1694 = vtanh.pop %v1680
  %v1695 = vxor.u32 %v1681, 2147483648
  %v1696 = vmul.f32 %v1695, 1.442695
  %v1697 = vpow.pop %v1696
  %v1698 = vadd.f32 %v1697, 1.0
  %v1699 = vrcp.pop %v1698
  %v1700 = vmul.f32 1.0, %v1699
  %v1701 = vmul.f32 %v1693, %v1529
  %v1702 = vmul.f32 %v1687, %v1694
  %v1703 = vadd.f32 %v1701, %v1702
  %v1704 = vtanh.pop %v1703
  %v1705 = vmul.f32 %v1700, %v1704
  %v1706 = vmax.f32 %v1705, 0.0
  %v1708 = vrot.slane %v662, 6
  %v1711 = vrot.slane %v836, 4
  %v1714 = vrot.slane %v1010, 2
  %v1717 = vrot.slane %v1358, 6
  %v1720 = vrot.slane %v1532, 4
  %v1723 = vrot.slane %v1706, 2
  %vm1725 = vcmask 1041408
  %v1726 = vsel %vm1725, %v488, %v1708
  %vm1727 = vcmask 1043456
  %v1728 = vsel %vm1727, %v1726, %v1711
  %vm1729 = vcmask 1045504
  %v1730 = vsel %vm1729, %v1728, %v1714
  %v1731 = vsel %vm1725, %v1184, %v1717
  %v1732 = vsel %vm1727, %v1731, %v1720
  %v1733 = vsel %vm1729, %v1732, %v1723
  %v1734 = vld [vmem:[%s6] sm:$0xff]
  %v1735 = vld [vmem:[%s6 + $0x8] sm:$0xff]
  %v1736 = vld [vmem:[%s6 + $0x10] sm:$0xff]
  %v1737 = vld [vmem:[%s6 + $0x18] sm:$0xff]
  %v1738 = vld [vmem:[%s7] sm:$0x1]
  %v1740 = vlaneseq
  %v1741 = vshrl.u32 %v1740, 7
  %v1742 = vsub.s32 0, %v1741
  %v1743 = vrot.slane %v1738, %v1742
  %v1746 = vsel %vm41, %v1730, 0
  %v1749 = vsel %vm41, %v1733, 0
  %1751 = vmatprep.subr.mxu0 0.0
  %1752 = vmatpush1.msra.mxu0 %v1734
  %1753 = vmatprep.subr.mxu0 0.0
  %1754 = vmatpush1.msra.mxu0 %v1735
  %1755 = vmatprep.subr.mxu0 0.0
  %1756 = vmatpush1.msra.mxu0 %v1736
  %1757 = vmatprep.subr.mxu0 0.0
  %1758 = vmatpush1.msra.mxu0 %v1737
  %1759 = vmatprep.subr.mxu0 0.0
  %1760 = vmatpush1.msra.mxu0 0.0
  %1761 = vmatprep.subr.mxu0 0.0
  %1762 = vmatpush1.msra.mxu0 0.0
  %1763 = vmatprep.subr.mxu0 0.0
  %1764 = vmatpush1.msra.mxu0 0.0
  %1765 = vmatprep.subr.mxu0 0.0
  %1766 = vmatpush1.msra.mxu0 0.0
  %1767 = vmatprep.subr.mxu0 0.0
  %1768 = vmatpush1.msra.mxu0 0.0
  %1769 = vmatprep.subr.mxu0 0.0
  %1770 = vmatpush1.msra.mxu0 0.0
  %1771 = vmatprep.subr.mxu0 0.0
  %1772 = vmatpush1.msra.mxu0 0.0
  %1773 = vmatprep.subr.mxu0 0.0
  %1774 = vmatpush1.msra.mxu0 0.0
  %1775 = vmatprep.subr.mxu0 0.0
  %1776 = vmatpush1.msra.mxu0 0.0
  %1777 = vmatprep.subr.mxu0 0.0
  %1778 = vmatpush1.msra.mxu0 0.0
  %1779 = vmatprep.subr.mxu0 0.0
  %1780 = vmatpush1.msra.mxu0 0.0
  %1781 = vmatprep.subr.mxu0 0.0
  %1782 = vmatpush1.msra.mxu0 0.0
  %1783 = vmatprep.subr.mxu0 0.0
  %1784 = vmatpush1.msra.mxu0 0.0
  %1785 = vmatprep.subr.mxu0 0.0
  %1786 = vmatpush1.msra.mxu0 0.0
  %1787 = vmatprep.subr.mxu0 0.0
  %1788 = vmatpush1.msra.mxu0 0.0
  %1789 = vmatprep.subr.mxu0 0.0
  %1790 = vmatpush1.msra.mxu0 0.0
  %1791 = vmatprep.subr.mxu0 0.0
  %1792 = vmatpush1.msra.mxu0 0.0
  %1793 = vmatprep.subr.mxu0 0.0
  %1794 = vmatpush1.msra.mxu0 0.0
  %1795 = vmatprep.subr.mxu0 0.0
  %1796 = vmatpush1.msra.mxu0 0.0
  %1797 = vmatprep.subr.mxu0 0.0
  %1798 = vmatpush1.msra.mxu0 0.0
  %1799 = vmatprep.subr.mxu0 0.0
  %1800 = vmatpush1.msra.mxu0 0.0
  %1801 = vmatprep.subr.mxu0 0.0
  %1802 = vmatpush1.msra.mxu0 0.0
  %1803 = vmatprep.subr.mxu0 0.0
  %1804 = vmatpush1.msra.mxu0 0.0
  %1805 = vmatprep.subr.mxu0 0.0
  %1806 = vmatpush1.msra.mxu0 0.0
  %1807 = vmatprep.subr.mxu0 0.0
  %1808 = vmatpush1.msra.mxu0 0.0
  %1809 = vmatprep.subr.mxu0 0.0
  %1810 = vmatpush1.msra.mxu0 0.0
  %1811 = vmatprep.subr.mxu0 0.0
  %1812 = vmatpush1.msra.mxu0 0.0
  %1813 = vmatprep.subr.mxu0 0.0
  %1814 = vmatpush1.msra.mxu0 0.0
  %1815 = vmatprep.mubr.f32.mxu0 0.0
  %1816 = vmatmul.mubr.f32.gmra.mrb[0].mxu0 %v1746
  %v1817 = vpop.f32.mrb[0].mxu0
  %v1818 = vadd.f32 %v1743, %v1817
  %v1819 = vpop.f32.mrb[0].mxu0
  %1820 = vmatprep.mubr.f32.mxu0 0.0
  %1821 = vmatmul.mubr.f32.gmra.mrb[0].mxu0 %v1749
  %v1822 = vpop.f32.mrb[0].mxu0
  %v1823 = vadd.f32 %v1743, %v1822
  %v1824 = vpop.f32.mrb[0].mxu0
  %1825 = vdwg.mxu0
  %1826 = vst [vmem:[%s8] sm:$0xff] %v1818
  %1827 = vst [vmem:[%s8 + $0x8] sm:$0xff] %v1823
  // Predicated region
  $region34: #{decoder_forward.1} parent=0 // pred_check
    _
  $region35: #{decoder_forward.1} parent=0 // pred_check_branch
    %1829 = sbr.rel (0) target = $region37
  $region36: #{decoder_forward.1} parent=0 // pred_region
    _
  $region37: #{decoder_forward.1} parent=0 // pred_fallthru
    _
  // Predicated region
  $region38: #{decoder_forward.1} parent=0 // pred_check
    _
  $region39: #{decoder_forward.1} parent=0 // pred_check_branch
    %1831 = sbr.rel (0) target = $region41
  $region40: #{decoder_forward.1} parent=0 // pred_region
    _
  $region41: #{decoder_forward.1} parent=0 // pred_fallthru
    _

</llo_original>
